<compile_context>
chip_gen: v6e
topology: v6e:2x2x1
jax: 0.10.0
libtpu: 0.0.40
codegen_flags: <defaults>
</compile_context>

<pallas_src>
import math

import jax
import jax.numpy as jnp
from jax.experimental import pallas as pl
from jax.experimental.pallas import tpu as pltpu

_BN_EPS = 1e-5
_NEG_BIG = -1e9            # bias for padded gene columns (exp -> 0, stays finite)


def _vmem_limit_bytes():
    """~75% of physical VMEM, capped at 100 MiB (v5e/v6e: 128 MiB, v7x: 64 MiB)."""
    cap = 64 * 1024 * 1024
    try:
        info = pltpu.get_tpu_info()
        cap = int(getattr(info, "vmem_capacity_bytes", cap))
    except Exception:
        pass
    return min(int(cap * 0.75), 100 * 1024 * 1024)


_VMEM_LIMIT = _vmem_limit_bytes()


def _round_up(n, m):
    return (n + m - 1) // m * m


def _pick_batch_block(B):
    """Batch blocks for the BN-free gene-tiled kernels (enables v7x dual-TC)."""
    if B % 256 == 0:
        return 128
    if B % 16 == 0 and B >= 32:
        return B // 2
    return B


def _pick_gene_tile(Gp, B, Bb, H, cache_logits):
    """Largest multiple of 128 dividing Gp whose double-buffered per-step footprint
    (worst of enc1 / generative tail) fits the VMEM budget."""
    enc_per_col = 2 * (B * 4 + (2 * H) * 2)                    # x f32 + W_x bf16
    tail_per_col = 2 * (
        (Bb * 2 if cache_logits else H * 2)                    # cached logits vs W_scale
        + H * 2                                                # W_drop bf16
        + Bb * 4 + Bb * 2                                      # x f32, mask bf16
        + 5 * 4                                                # per-gene rows
        + 3 * Bb * 2)                                          # bf16 outputs
    per_col = max(enc_per_col, tail_per_col)
    fixed = 4 * (1 << 20) + 4 * B * (2 * H) * 4                # resident acts/acc + slack
    budget = _VMEM_LIMIT - fixed
    t = max(min((budget // per_col) // 128 * 128, Gp, 4096), 128)
    while Gp % t:
        t -= 128
    return t


# ----------------------------------------------------------------------------
# in-kernel math helpers
# ----------------------------------------------------------------------------

def _softplus(x):
    return jnp.maximum(x, 0.0) + jnp.log(1.0 + jnp.exp(-jnp.abs(x)))


def _lgamma_stirling(z):
    # lgamma(z) for z > 0: shift by 6 (recurrence) then 3-term Stirling series.
    # The 6 recurrence logs are folded into 2 product-logs (two 3-term products so
    # the product stays well inside f32 range even for counts ~1e9).
    p0 = z * (z + 1.0) * (z + 2.0)
    p1 = (z + 3.0) * (z + 4.0) * (z + 5.0)
    corr = jnp.log(p0) + jnp.log(p1)
    z6 = z + 6.0
    inv = pl.reciprocal(z6, approx=True)
    inv2 = inv * inv
    series = inv * (1.0 / 12.0 - inv2 * (1.0 / 360.0 - inv2 * (1.0 / 1260.0)))
    return (z6 - 0.5) * jnp.log(z6) - z6 + 0.9189385332046727 + series - corr


def _bn_lrelu(y, gamma, beta, *, leaky):
    m = jnp.mean(y, axis=0, keepdims=True)
    v = jnp.mean((y - m) ** 2, axis=0, keepdims=True)
    y = (y - m) * jax.lax.rsqrt(v + _BN_EPS) * gamma + beta
    if leaky:
        y = jnp.where(y > 0, y, 0.01 * y)
    return y


# ----------------------------------------------------------------------------
# Kernel 1: fused preprocess + encoder layer1 (z & library) + BN + LeakyReLU + heads
# ----------------------------------------------------------------------------

def _enc1_kernel(x_ref, inv_rs_ref, bv_ref, wx_ref, wb_ref, b_ref, g_ref, beta_ref,
                 wh_ref, bh_ref, h_ref, heads_ref, acc_ref):
    k = pl.program_id(0)

    @pl.when(k == 0)
    def _():
        acc_ref[...] = (jnp.dot(bv_ref[...].astype(jnp.bfloat16), wb_ref[...],
                                preferred_element_type=jnp.float32) + b_ref[...])

    # preprocess this gene tile: log(1 + x * sf/(rowsum+1e-6)); never hits HBM
    x_ = jnp.log(1.0 + x_ref[...] * inv_rs_ref[...])
    acc_ref[...] += jnp.dot(x_.astype(jnp.bfloat16), wx_ref[...],
                            preferred_element_type=jnp.float32)

    @pl.when(k == pl.num_programs(0) - 1)
    def _():
        h = _bn_lrelu(acc_ref[...], g_ref[...], beta_ref[...], leaky=True)
        h_ref[...] = h
        heads_ref[...] = (jnp.dot(h.astype(jnp.bfloat16), wh_ref[...],
                                  preferred_element_type=jnp.float32) + bh_ref[...])


def encoder_stage1(xp, inv_rs, batch_vec, p, *, tg):
    B, Gp = xp.shape
    H2 = p["w_x"].shape[1]
    nh = p["b_heads"].shape[1]
    nb = batch_vec.shape[1]
    fixed = lambda k: (0, 0)
    return pl.pallas_call(
        _enc1_kernel,
        out_shape=(jax.ShapeDtypeStruct((B, H2), jnp.float32),
                   jax.ShapeDtypeStruct((B, nh), jnp.float32)),
        grid=(Gp // tg,),
        in_specs=[
            pl.BlockSpec((B, tg), lambda k: (0, k)),     # raw counts tile
            pl.BlockSpec((B, 1), fixed),                 # sf / (rowsum + 1e-6)
            pl.BlockSpec((B, nb), fixed),                # batch one-hots
            pl.BlockSpec((tg, H2), lambda k: (k, 0)),    # W_x tile (bf16)
            pl.BlockSpec((nb, H2), fixed),               # W_b (bf16)
            pl.BlockSpec((1, H2), fixed),                # bias
            pl.BlockSpec((1, H2), fixed),                # bn gamma
            pl.BlockSpec((1, H2), fixed),                # bn beta
            pl.BlockSpec((H2, nh), fixed),               # fused head weight (bf16)
            pl.BlockSpec((1, nh), fixed),                # fused head bias
        ],
        out_specs=(pl.BlockSpec((B, H2), fixed), pl.BlockSpec((B, nh), fixed)),
        scratch_shapes=[pltpu.VMEM((B, H2), jnp.float32)],
        compiler_params=pltpu.CompilerParams(
            dimension_semantics=("arbitrary",),
            vmem_limit_bytes=_VMEM_LIMIT),
    )(xp, inv_rs, batch_vec, p["w_x"], p["w_b"], p["b"], p["gamma"], p["beta"],
      p["w_heads"], p["b_heads"])


# ----------------------------------------------------------------------------
# Kernels 2/4: one BPredictor group (3 predictors batched on the feature axis)
# Kernel 3: decoder hidden layer
# ----------------------------------------------------------------------------

def _predictor_group_kernel(h_ref, w1_ref, b1_ref, g1_ref, be1_ref,
                            w2_ref, b2_ref, g2_ref, be2_ref, o_ref):
    y = (jnp.dot(h_ref[...].astype(jnp.bfloat16), w1_ref[...],
                 preferred_element_type=jnp.float32) + b1_ref[...])
    y = _bn_lrelu(y, g1_ref[...], be1_ref[...], leaky=True)
    y2 = (jnp.dot(y.astype(jnp.bfloat16), w2_ref[...],
                  preferred_element_type=jnp.float32) + b2_ref[...])
    o_ref[...] = _bn_lrelu(y2, g2_ref[...], be2_ref[...], leaky=False)


def _dec1_kernel(z_ref, bv_ref, wz_ref, wb_ref, b_ref, g_ref, beta_ref, o_ref):
    y = (jnp.dot(z_ref[...].astype(jnp.bfloat16), wz_ref[...],
                 preferred_element_type=jnp.float32)
         + jnp.dot(bv_ref[...].astype(jnp.bfloat16), wb_ref[...],
                   preferred_element_type=jnp.float32)
         + b_ref[...])
    o_ref[...] = _bn_lrelu(y, g_ref[...], beta_ref[...], leaky=True)


def _full_call(kernel, out_shape, *inputs):
    # small activations: single invocation, whole arrays in VMEM
    return pl.pallas_call(kernel, out_shape=out_shape)(*inputs)


def predictor_group_forward(h, p):
    out_shape = jax.ShapeDtypeStruct((h.shape[0], p["b2"].shape[1]), jnp.float32)
    return _full_call(_predictor_group_kernel, out_shape,
                      h, p["w1"], p["b1"], p["g1"], p["be1"],
                      p["w2"], p["b2"], p["g2"], p["be2"])


def decoder_stage1(z, batch_vec, p):
    out_shape = jax.ShapeDtypeStruct((z.shape[0], p["w_z"].shape[1]), jnp.float32)
    return _full_call(_dec1_kernel, out_shape,
                      z, batch_vec, p["w_z"], p["w_b"], p["b"], p["gamma"], p["beta"])


# ----------------------------------------------------------------------------
# Kernel 5: scale logits + online logsumexp (optionally caching bf16 logits)
# ----------------------------------------------------------------------------

def _logsumexp_update(logits, m_sc, l_sc, logz_ref):
    j = pl.program_id(1)

    @pl.when(j == 0)
    def _():
        m_sc[...] = jnp.full_like(m_sc, -1e30)
        l_sc[...] = jnp.zeros_like(l_sc)

    m_new = jnp.maximum(m_sc[...], jnp.max(logits, axis=1, keepdims=True))
    alpha = jnp.exp(m_sc[...] - m_new)
    l_sc[...] = alpha * l_sc[...] + jnp.sum(jnp.exp(logits - m_new),
                                            axis=1, keepdims=True)
    m_sc[...] = m_new

    @pl.when(j == pl.num_programs(1) - 1)
    def _():
        logz_ref[...] = m_sc[...] + jnp.log(l_sc[...])


def _scale_logits_cache_kernel(h_ref, ws_ref, bs_ref, logits_ref, logz_ref,
                               m_sc, l_sc):
    logits = (jnp.dot(h_ref[...].astype(jnp.bfloat16), ws_ref[...],
                      preferred_element_type=jnp.float32) + bs_ref[...])
    logits_ref[...] = logits.astype(logits_ref.dtype)
    _logsumexp_update(logits, m_sc, l_sc, logz_ref)


def _scale_logits_stats_kernel(h_ref, ws_ref, bs_ref, logz_ref, m_sc, l_sc):
    logits = (jnp.dot(h_ref[...].astype(jnp.bfloat16), ws_ref[...],
                      preferred_element_type=jnp.float32) + bs_ref[...])
    _logsumexp_update(logits, m_sc, l_sc, logz_ref)


def scale_logits_stage(h_d, dec_out, *, tg, bb, cache_logits):
    B, H = h_d.shape
    Gp = dec_out["w_scale"].shape[1]
    grid = (B // bb, Gp // tg)
    h_spec = pl.BlockSpec((bb, H), lambda b, j: (b, 0))
    w_spec = pl.BlockSpec((H, tg), lambda b, j: (0, j))
    row_spec = pl.BlockSpec((1, tg), lambda b, j: (0, j))
    logz_spec = pl.BlockSpec((bb, 1), lambda b, j: (b, 0))
    cp = pltpu.CompilerParams(dimension_semantics=("parallel", "arbitrary"),
                              vmem_limit_bytes=_VMEM_LIMIT)
    scratch = [pltpu.VMEM((bb, 1), jnp.float32), pltpu.VMEM((bb, 1), jnp.float32)]
    args = (h_d, dec_out["w_scale"], dec_out["b_scale"])
    if cache_logits:
        logits, logz = pl.pallas_call(
            _scale_logits_cache_kernel,
            out_shape=(jax.ShapeDtypeStruct((B, Gp), jnp.bfloat16),
                       jax.ShapeDtypeStruct((B, 1), jnp.float32)),
            grid=grid,
            in_specs=[h_spec, w_spec, row_spec],
            out_specs=(pl.BlockSpec((bb, tg), lambda b, j: (b, j)), logz_spec),
            scratch_shapes=scratch, compiler_params=cp)(*args)
        return logits, logz
    logz = pl.pallas_call(
        _scale_logits_stats_kernel,
        out_shape=jax.ShapeDtypeStruct((B, 1), jnp.float32),
        grid=grid,
        in_specs=[h_spec, w_spec, row_spec],
        out_specs=logz_spec,
        scratch_shapes=scratch, compiler_params=cp)(*args)
    return None, logz


# ----------------------------------------------------------------------------
# Kernel 6: fused generative tail (dropout matmul -> softmax -> px_rate -> ZINB NLL)
# ----------------------------------------------------------------------------

def _zinb_tail(logits, zi, logz, lib, x, theta, log_theta, lgth, mask):
    eps = 1e-8
    px_scale = jnp.exp(logits - logz)                    # softmax over all genes
    px_rate = px_scale * jnp.exp(lib)                    # exp(lib) is (bb,1): cheap
    log_mu = (lib - logz) + logits                       # log(px_rate), reused below
    softplus_pi = _softplus(-zi)
    log_theta_mu_eps = jnp.log(theta + px_rate + eps)
    pi_theta_log = -zi + theta * (log_theta - log_theta_mu_eps)
    case_zero = _softplus(pi_theta_log) - softplus_pi
    lg = _lgamma_stirling(x + theta) - _lgamma_stirling(x + 1.0) - lgth
    case_nonzero = (-softplus_pi + pi_theta_log
                    + x * (log_mu - log_theta_mu_eps) + lg)
    log_prob = jnp.where(x < eps, case_zero, case_nonzero)
    nll_part = jnp.sum(-log_prob * mask, axis=1, keepdims=True)
    return px_scale, px_rate, nll_part


def _gen_tail_common(logits, h_ref, wd_ref, bd_ref, logz_ref, lib_ref, x_ref,
                     th_ref, lth_ref, lgth_ref, mask_ref,
                     scale_ref, rate_ref, drop_ref, nll_ref):
    j = pl.program_id(1)
    zi = (jnp.dot(h_ref[...].astype(jnp.bfloat16), wd_ref[...],
                  preferred_element_type=jnp.float32) + bd_ref[...])
    px_scale, px_rate, part = _zinb_tail(
        logits, zi, logz_ref[...], lib_ref[...], x_ref[...],
        th_ref[...], lth_ref[...], lgth_ref[...], mask_ref[...].astype(jnp.float32))
    scale_ref[...] = px_scale.astype(scale_ref.dtype)
    rate_ref[...] = px_rate.astype(rate_ref.dtype)
    drop_ref[...] = zi.astype(drop_ref.dtype)

    @pl.when(j == 0)
    def _():
        nll_ref[...] = jnp.zeros_like(nll_ref)

    nll_ref[...] += part


def _gen_tail_cached_kernel(h_ref, lg_ref, wd_ref, bd_ref, logz_ref, lib_ref,
                            x_ref, th_ref, lth_ref, lgth_ref, mask_ref,
                            scale_ref, rate_ref, drop_ref, nll_ref):
    _gen_tail_common(lg_ref[...].astype(jnp.float32), h_ref, wd_ref, bd_ref,
                     logz_ref, lib_ref, x_ref, th_ref, lth_ref, lgth_ref, mask_ref,
                     scale_ref, rate_ref, drop_ref, nll_ref)


def _gen_tail_recompute_kernel(h_ref, ws_ref, bs_ref, wd_ref, bd_ref, logz_ref,
                               lib_ref, x_ref, th_ref, lth_ref, lgth_ref, mask_ref,
                               scale_ref, rate_ref, drop_ref, nll_ref):
    logits = (jnp.dot(h_ref[...].astype(jnp.bfloat16), ws_ref[...],
                      preferred_element_type=jnp.float32) + bs_ref[...])
    _gen_tail_common(logits, h_ref, wd_ref, bd_ref, logz_ref, lib_ref, x_ref,
                     th_ref, lth_ref, lgth_ref, mask_ref,
                     scale_ref, rate_ref, drop_ref, nll_ref)


def generative_tail(h_d, logits_cache, logz, library, xp, theta_row, log_theta_row,
                    lgth_row, maskp, dec_out, *, tg, bb):
    B, H = h_d.shape
    Gp = xp.shape[1]
    grid = (B // bb, Gp // tg)
    bj = lambda b, j: (b, j)
    b0 = lambda b, j: (b, 0)
    g0 = lambda b, j: (0, j)
    cp = pltpu.CompilerParams(dimension_semantics=("parallel", "arbitrary"),
                              vmem_limit_bytes=_VMEM_LIMIT)
    out_shape = (jax.ShapeDtypeStruct((B, Gp), jnp.bfloat16),    # px_scale
                 jax.ShapeDtypeStruct((B, Gp), jnp.bfloat16),    # px_rate
                 jax.ShapeDtypeStruct((B, Gp), jnp.bfloat16),    # px_dropout
                 jax.ShapeDtypeStruct((B, 1), jnp.float32))      # per-cell NLL
    out_specs = (pl.BlockSpec((bb, tg), bj), pl.BlockSpec((bb, tg), bj),
                 pl.BlockSpec((bb, tg), bj), pl.BlockSpec((bb, 1), b0))
    common_in = [
        pl.BlockSpec((H, tg), g0),       # W_drop (bf16)
        pl.BlockSpec((1, tg), g0),       # b_drop
        pl.BlockSpec((bb, 1), b0),       # logZ
        pl.BlockSpec((bb, 1), b0),       # library
        pl.BlockSpec((bb, tg), bj),      # raw counts x
        pl.BlockSpec((1, tg), g0),       # theta
        pl.BlockSpec((1, tg), g0),       # log(theta+eps)
        pl.BlockSpec((1, tg), g0),       # lgamma(theta)
        pl.BlockSpec((bb, tg), bj),      # presence mask (bf16)
    ]
    h_spec = pl.BlockSpec((bb, H), b0)
    if logits_cache is not None:
        kernel = _gen_tail_cached_kernel
        in_specs = [h_spec, pl.BlockSpec((bb, tg), bj)] + common_in
        args = (h_d, logits_cache, dec_out["w_drop"], dec_out["b_drop"], logz,
                library, xp, theta_row, log_theta_row, lgth_row, maskp)
    else:
        kernel = _gen_tail_recompute_kernel
        in_specs = [h_spec, pl.BlockSpec((H, tg), g0),
                    pl.BlockSpec((1, tg), g0)] + common_in
        args = (h_d, dec_out["w_scale"], dec_out["b_scale"], dec_out["w_drop"],
                dec_out["b_drop"], logz, library, xp, theta_row, log_theta_row,
                lgth_row, maskp)
    return pl.pallas_call(kernel, out_shape=out_shape, grid=grid,
                          in_specs=in_specs, out_specs=out_specs,
                          compiler_params=cp)(*args)


# ----------------------------------------------------------------------------
# Parameters (xavier-uniform weights / zero biases, as in init_weights).
# Gene axis padded to a multiple of 128; padded scale-logit biases = -1e9 so the
# softmax denominator ignores padding (matches reference: mask applies to the loss
# only, not the softmax).
# ----------------------------------------------------------------------------

def init_params(key, n_input, batch_level_sizes, n_hidden, n_latent):
    n_batch = int(sum(batch_level_sizes))
    G, H, L = n_input, n_hidden, n_latent
    Gp = _round_up(G, 128)
    keys = iter(jax.random.split(key, 64))

    def xavier(fi, fo):
        limit = math.sqrt(6.0 / (fi + fo))
        return jax.random.uniform(next(keys), (fi, fo), jnp.float32, -limit, limit)

    def pad_rows(w):
        return jnp.pad(w, ((0, Gp - G), (0, 0)))

    def pad_cols(w, value=0.0):
        return jnp.pad(w, ((0, 0), (0, Gp - G)), constant_values=value)

    # --- encoders' first layers: Linear(G + n_batch, H) each, fused on output ---
    wz1 = xavier(G + n_batch, H)
    wl1 = xavier(G + n_batch, H)
    w1 = jnp.concatenate([wz1, wl1], axis=1)                  # [G+n_batch, 2H]
    enc1 = {
        "w_x": pad_rows(w1[:G]).astype(jnp.bfloat16),
        "w_b": w1[G:].astype(jnp.bfloat16),
        "b": jnp.zeros((1, 2 * H), jnp.float32),
        "gamma": jnp.ones((1, 2 * H), jnp.float32),
        "beta": jnp.zeros((1, 2 * H), jnp.float32),
    }
    # fused mean/var heads (block-diagonal): h_z -> [qz_m | qz_logv], h_l -> [ql_m | ql_logv]
    w_heads = jnp.zeros((2 * H, 2 * L + 2), jnp.float32)
    w_heads = w_heads.at[:H, :L].set(xavier(H, L))
    w_heads = w_heads.at[:H, L:2 * L].set(xavier(H, L))
    w_heads = w_heads.at[H:, 2 * L:2 * L + 1].set(xavier(H, 1))
    w_heads = w_heads.at[H:, 2 * L + 1:].set(xavier(H, 1))
    enc1["w_heads"] = w_heads.astype(jnp.bfloat16)
    enc1["b_heads"] = jnp.zeros((1, 2 * L + 2), jnp.float32)

    # --- decoder hidden: Linear(L + n_batch, H) ---
    wd1 = xavier(L + n_batch, H)
    dec1 = {
        "w_z": wd1[:L].astype(jnp.bfloat16),
        "w_b": wd1[L:].astype(jnp.bfloat16),
        "b": jnp.zeros((1, H), jnp.float32),
        "gamma": jnp.ones((1, H), jnp.float32),
        "beta": jnp.zeros((1, H), jnp.float32),
    }
    # TODO(synk): optionally store the big streamed weights in fp8 (e4m3) on v7x.
    dec_out = {
        "w_scale": pad_cols(xavier(H, G)).astype(jnp.bfloat16),
        "b_scale": pad_cols(jnp.zeros((1, G), jnp.float32), value=_NEG_BIG),
        "w_drop": pad_cols(xavier(H, G)).astype(jnp.bfloat16),
        "b_drop": jnp.zeros((1, Gp), jnp.float32),
    }

    def predictor_group():
        w1s, w2s = [], []
        for nb in batch_level_sizes:
            w1s.append(xavier(H, H))
            w2s.append(xavier(H, nb))
        wide = len(batch_level_sizes) * H
        w2 = jnp.zeros((wide, n_batch), jnp.float32)          # block-diagonal layer-2
        c = 0
        for i, w in enumerate(w2s):
            w2 = w2.at[i * H:(i + 1) * H, c:c + w.shape[1]].set(w)
            c += w.shape[1]
        return {
            "w1": jnp.concatenate(w1s, axis=1).astype(jnp.bfloat16),
            "b1": jnp.zeros((1, wide), jnp.float32),
            "g1": jnp.ones((1, wide), jnp.float32),
            "be1": jnp.zeros((1, wide), jnp.float32),
            "w2": w2.astype(jnp.bfloat16),
            "b2": jnp.zeros((1, n_batch), jnp.float32),
            "g2": jnp.ones((1, n_batch), jnp.float32),
            "be2": jnp.zeros((1, n_batch), jnp.float32),
        }

    return {
        "px_r": jax.random.normal(next(keys), (G,), jnp.float32),
        "enc1": enc1,
        "dec1": dec1,
        "dec_out": dec_out,
        "x_pred": predictor_group(),
        "z_pred": predictor_group(),
    }


# ----------------------------------------------------------------------------
# glue (tiny tensors only) + loss
# ----------------------------------------------------------------------------

def _kl_normal(m1, s1, m2, s2):
    return jnp.log(s2 / s1) + (s1 ** 2 + (m1 - m2) ** 2) / (2.0 * s2 ** 2) - 0.5


def _cross_entropy(logits, onehot_targets):
    targets = jnp.argmax(onehot_targets, axis=1)
    logz = jax.nn.logsumexp(logits, axis=1)
    picked = jnp.take_along_axis(logits, targets[:, None], axis=1)[:, 0]
    return jnp.mean(logz - picked)


def _disc_loss(preds, batch_vecs):
    losses = [_cross_entropy(p, bv) for p, bv in zip(preds, batch_vecs)]
    return jnp.mean(jnp.stack(losses)), losses


def bascvi_forward(params, batch, key, *, scaling_factor=10000.0,
                   kl_warmup_weight=1.0, disc_loss_weight=10.0,
                   disc_warmup_weight=1.0, kl_loss_weight=1.0,
                   sample_counts=True):
    x = batch["x"].astype(jnp.float32)
    B, G = x.shape
    H = params["dec1"]["w_z"].shape[1]
    L = (params["enc1"]["b_heads"].shape[1] - 2) // 2
    Gp = params["dec_out"]["w_scale"].shape[1]
    pad = Gp - G

    batch_vecs = [batch["modality_vec"].astype(jnp.float32),
                  batch["study_vec"].astype(jnp.float32),
                  batch["sample_vec"].astype(jnp.float32)]
    sizes = [v.shape[1] for v in batch_vecs]
    splits, acc = [], 0
    for nb in sizes[:-1]:
        acc += nb
        splits.append(acc)
    batch_vec = jnp.concatenate(batch_vecs, axis=1)

    # pad gene axis to a multiple of 128 (keeps tiling & lane-dense stores intact)
    # TODO(synk): stream x as int16/bf16 when the count range permits (halves reads).
    mask = batch["feature_presence_mask"].astype(jnp.bfloat16)
    if pad:
        xp = jnp.pad(x, ((0, 0), (0, pad)))
        mask = jnp.pad(mask, ((0, 0), (0, pad)))
    else:
        xp = x

    rowsum = jnp.sum(x, axis=1, keepdims=True)
    inv_rs = scaling_factor / (rowsum + 1e-6)           # no per-element divide in-kernel

    bb = _pick_batch_block(B)
    cache_logits = (2 * B <= H)                         # caching beats re-streaming W_scale
    tg = _pick_gene_tile(Gp, B, bb, H, cache_logits)

    # --- inference: fused preprocess + both encoder layer1 + heads (one kernel) ---
    h_all, heads_raw = encoder_stage1(xp, inv_rs, batch_vec, params["enc1"], tg=tg)
    h_z = h_all[:, :H]
    qz_m = heads_raw[:, :L]
    qz_v = jnp.exp(heads_raw[:, L:2 * L])
    ql_m = heads_raw[:, 2 * L:2 * L + 1]
    ql_v = jnp.exp(heads_raw[:, 2 * L + 1:2 * L + 2])

    k_z, k_l, k_s = jax.random.split(key, 3)
    z = qz_m + jnp.sqrt(qz_v) * jax.random.normal(k_z, qz_m.shape, jnp.float32)
    library = ql_m + jnp.sqrt(ql_v) * jax.random.normal(k_l, ql_m.shape, jnp.float32)

    x_pred_logits = predictor_group_forward(h_z, params["x_pred"])
    x_preds = jnp.split(x_pred_logits, splits, axis=1)

    inference_outputs = dict(z=z, qz_m=qz_m, qz_v=qz_v, ql_m=ql_m, ql_v=ql_v,
                             library=library, x_preds=x_preds)

    # --- generative ---
    h_d = decoder_stage1(z, batch_vec, params["dec1"])
    z_pred_logits = predictor_group_forward(h_d, params["z_pred"])
    z_preds = jnp.split(z_pred_logits, splits, axis=1)

    px_r_p = jnp.pad(params["px_r"], (0, pad)) if pad else params["px_r"]
    theta_row = jnp.exp(px_r_p)[None, :]                 # (1, Gp)
    log_theta_row = jnp.log(theta_row + 1e-8)            # per-gene only, hoisted
    lgth_row = jax.lax.lgamma(theta_row)                 # per-gene only, hoisted
    theta = jnp.exp(params["px_r"])                      # unpadded, returned

    logits_cache, logz = scale_logits_stage(h_d, params["dec_out"], tg=tg, bb=bb,
                                            cache_logits=cache_logits)
    px_scale_p, px_rate_p, px_drop_p, nll = generative_tail(
        h_d, logits_cache, logz, library, xp, theta_row, log_theta_row, lgth_row,
        mask, params["dec_out"], tg=tg, bb=bb)
    reconst = nll[:, 0]
    px_scale = px_scale_p[:, :G]
    px_rate = px_rate_p[:, :G]
    px_dropout = px_drop_p[:, :G]

    # ZINB sample (counts_pred) -- plain JAX RNG; avoids materializing theta broadcast
    if sample_counts:
        k_gamma, k_pois, k_bern = jax.random.split(k_s, 3)
        rate_f32 = px_rate.astype(jnp.float32)
        gamma_s = jax.random.gamma(k_gamma, theta[None, :], shape=rate_f32.shape)
        gamma_s = gamma_s * (rate_f32 / theta[None, :])
        nb_sample = jax.random.poisson(k_pois, gamma_s).astype(jnp.float32)
        pi = jax.nn.sigmoid(px_dropout.astype(jnp.float32))
        counts_pred = jnp.where(jax.random.bernoulli(k_bern, pi), 0.0, nb_sample)
    else:
        counts_pred = None

    generative_outputs = dict(px_scale=px_scale, px_r=theta, px_rate=px_rate,
                              px_dropout=px_dropout, z_preds=z_preds,
                              counts_pred=counts_pred)

    # --- loss (optimizer_idx = 0) ---
    kl_z = _kl_normal(qz_m, jnp.sqrt(qz_v + 1e-6),
                      jnp.zeros_like(qz_m), jnp.ones_like(qz_v)).sum(axis=1)
    kl_l = _kl_normal(ql_m, jnp.sqrt(ql_v + 1e-6),
                      batch["local_l_mean"],
                      jnp.sqrt(batch["local_l_var"] + 1e-6)).sum(axis=1)
    weighted_kl = kl_z + kl_l

    z_disc_red, z_disc = _disc_loss(z_preds, batch_vecs)
    x_disc_red, x_disc = _disc_loss(x_preds, batch_vecs)
    disc_red = z_disc_red + x_disc_red

    reconst_mean = jnp.mean(reconst)
    kl_mean = jnp.mean(weighted_kl)
    loss = (reconst_mean
            + kl_warmup_weight * kl_loss_weight * kl_mean
            - disc_loss_weight * disc_warmup_weight * disc_red)

    losses = {"loss": loss, "rec_loss": reconst_mean, "kl_loss": kl_mean,
              "kl_normal": jnp.mean(kl_z), "kl_library": jnp.mean(kl_l),
              "disc_loss": disc_red}
    for i, v in enumerate(z_disc):
        losses[f"disc_loss_z_{i}"] = v
    for i, v in enumerate(x_disc):
        losses[f"disc_loss_x_{i}"] = v

    return inference_outputs, generative_outputs, losses


# ----------------------------------------------------------------------------
# Demo
# ----------------------------------------------------------------------------

if __name__ == "__main__":
    B, G, H, L = 8, 64, 32, 10
    batch_level_sizes = [2, 3, 4]

    root = jax.random.PRNGKey(0)
    kp, kx, km, ks, ksa, kfwd = jax.random.split(root, 6)

    params = init_params(kp, G, batch_level_sizes, H, L)

    x = jax.random.poisson(kx, 2.0, (B, G)).astype(jnp.float32)

    def onehot(k, n):
        idx = jax.random.randint(k, (B,), 0, n)
        return jax.nn.one_hot(idx, n, dtype=jnp.float32)

    lib_log_mean = jnp.log(jnp.sum(x, axis=1).mean() + 1.0)
    batch = {
        "x": x,
        "modality_vec": onehot(km, batch_level_sizes[0]),
        "study_vec": onehot(ks, batch_level_sizes[1]),
        "sample_vec": onehot(ksa, batch_level_sizes[2]),
        "local_l_mean": jnp.full((B, 1), lib_log_mean, jnp.float32),
        "local_l_var": jnp.full((B, 1), 1.0, jnp.float32),
        "feature_presence_mask": jnp.ones((B, G), jnp.float32),
    }

    fwd = jax.jit(bascvi_forward)
    inf_out, gen_out, losses = fwd(params, batch, kfwd)
    jax.block_until_ready(losses["loss"])
    assert bool(jnp.isfinite(losses["loss"]))
    assert gen_out["px_scale"].shape == (B, G)
    assert gen_out["counts_pred"].shape == (B, G)
    print("KERNEL_OK")
</pallas_src>

<mosaic_0001>
module attributes {stable_mosaic.version = 11 : i64} {
  func.func @_enc1_kernel(%arg0: i32, %arg1: memref<8x128xf32, #tpu.memory_space<vmem>>, %arg2: memref<8x1xf32, #tpu.memory_space<vmem>>, %arg3: memref<8x9xf32, #tpu.memory_space<vmem>>, %arg4: memref<128x64xbf16, #tpu.memory_space<vmem>>, %arg5: memref<9x64xbf16, #tpu.memory_space<vmem>>, %arg6: memref<1x64xf32, #tpu.memory_space<vmem>>, %arg7: memref<1x64xf32, #tpu.memory_space<vmem>>, %arg8: memref<1x64xf32, #tpu.memory_space<vmem>>, %arg9: memref<64x22xbf16, #tpu.memory_space<vmem>>, %arg10: memref<1x22xf32, #tpu.memory_space<vmem>>, %arg11: memref<8x64xf32, #tpu.memory_space<vmem>>, %arg12: memref<8x22xf32, #tpu.memory_space<vmem>>, %arg13: memref<8x64xf32, #tpu.memory_space<vmem>>) attributes {dimension_semantics = [#tpu.dimension_semantics<arbitrary>], iteration_bounds = array<i64: 1>, scalar_prefetch = 0 : i64, scratch_operands = 1 : i64, tpu.core_type = #tpu.core_type<tc>, window_params = [{transform_indices = @transform_0, window_bounds = array<i64: 8, 128>}, {pipeline_mode = #tpu.pipeline_mode<synchronous>, transform_indices = @transform_1, window_bounds = array<i64: 8, 1>}, {pipeline_mode = #tpu.pipeline_mode<synchronous>, transform_indices = @transform_2, window_bounds = array<i64: 8, 9>}, {transform_indices = @transform_3, window_bounds = array<i64: 128, 64>}, {pipeline_mode = #tpu.pipeline_mode<synchronous>, transform_indices = @transform_4, window_bounds = array<i64: 9, 64>}, {pipeline_mode = #tpu.pipeline_mode<synchronous>, transform_indices = @transform_5, window_bounds = array<i64: 1, 64>}, {pipeline_mode = #tpu.pipeline_mode<synchronous>, transform_indices = @transform_6, window_bounds = array<i64: 1, 64>}, {pipeline_mode = #tpu.pipeline_mode<synchronous>, transform_indices = @transform_7, window_bounds = array<i64: 1, 64>}, {pipeline_mode = #tpu.pipeline_mode<synchronous>, transform_indices = @transform_8, window_bounds = array<i64: 64, 22>}, {pipeline_mode = #tpu.pipeline_mode<synchronous>, transform_indices = @transform_9, window_bounds = array<i64: 1, 22>}, {pipeline_mode = #tpu.pipeline_mode<synchronous>, transform_indices = @transform_10, window_bounds = array<i64: 8, 64>}, {pipeline_mode = #tpu.pipeline_mode<synchronous>, transform_indices = @transform_11, window_bounds = array<i64: 8, 22>}]} {
    %c0_i32 = arith.constant 0 : i32
    %0 = arith.cmpi eq, %arg0, %c0_i32 : i32
    %1 = arith.extui %0 : i1 to i32
    %c0_i32_0 = arith.constant 0 : i32
    %2 = arith.cmpi ne, %1, %c0_i32_0 : i32
    scf.if %2 {
      %c0_13 = arith.constant 0 : index
      %c0_14 = arith.constant 0 : index
      %19 = vector.load %arg3[%c0_13, %c0_14] : memref<8x9xf32, #tpu.memory_space<vmem>>, vector<8x9xf32>
      %20 = arith.truncf %19 : vector<8x9xf32> to vector<8x9xbf16>
      %c0_15 = arith.constant 0 : index
      %c0_16 = arith.constant 0 : index
      %21 = vector.load %arg5[%c0_15, %c0_16] : memref<9x64xbf16, #tpu.memory_space<vmem>>, vector<9x64xbf16>
      %cst_17 = arith.constant dense<0.000000e+00> : vector<8x64xf32>
      %22 = tpu.matmul %20, %21, %cst_17 {dimension_numbers = #tpu.dot_dimension_numbers<[1], [0], [0], [1], [0, 0, 1, 1], [], []>} : vector<8x9xbf16>, vector<9x64xbf16>, vector<8x64xf32> -> vector<8x64xf32>
      %c0_18 = arith.constant 0 : index
      %c0_19 = arith.constant 0 : index
      %23 = vector.load %arg6[%c0_18, %c0_19] : memref<1x64xf32, #tpu.memory_space<vmem>>, vector<1x64xf32>
      %24 = vector.broadcast %23 : vector<1x64xf32> to vector<8x64xf32>
      %25 = arith.addf %22, %24 : vector<8x64xf32>
      %c0_20 = arith.constant 0 : index
      %c0_21 = arith.constant 0 : index
      %26 = vector.load %arg13[%c0_20, %c0_21] : memref<8x64xf32, #tpu.memory_space<vmem>>, vector<8x64xf32>
      tpu.vector_store %arg13[%c0_20, %c0_21], %25 {strides = array<i32>} : memref<8x64xf32, #tpu.memory_space<vmem>>, vector<8x64xf32>,
    } else {
    }
    %c0 = arith.constant 0 : index
    %c0_1 = arith.constant 0 : index
    %3 = vector.load %arg1[%c0, %c0_1] : memref<8x128xf32, #tpu.memory_space<vmem>>, vector<8x128xf32>
    %c0_2 = arith.constant 0 : index
    %c0_3 = arith.constant 0 : index
    %4 = vector.load %arg2[%c0_2, %c0_3] : memref<8x1xf32, #tpu.memory_space<vmem>>, vector<8x1xf32>
    %5 = vector.broadcast %4 : vector<8x1xf32> to vector<8x128xf32>
    %6 = arith.mulf %3, %5 : vector<8x128xf32>
    %cst = arith.constant 1.000000e+00 : f32
    %7 = vector.broadcast %cst : f32 to vector<8x128xf32>
    %8 = arith.addf %7, %6 : vector<8x128xf32>
    %9 = math.log %8 : vector<8x128xf32>
    %c0_4 = arith.constant 0 : index
    %c0_5 = arith.constant 0 : index
    %10 = vector.load %arg13[%c0_4, %c0_5] : memref<8x64xf32, #tpu.memory_space<vmem>>, vector<8x64xf32>
    %11 = arith.truncf %9 : vector<8x128xf32> to vector<8x128xbf16>
    %c0_6 = arith.constant 0 : index
    %c0_7 = arith.constant 0 : index
    %12 = vector.load %arg4[%c0_6, %c0_7] : memref<128x64xbf16, #tpu.memory_space<vmem>>, vector<128x64xbf16>
    %cst_8 = arith.constant dense<0.000000e+00> : vector<8x64xf32>
    %13 = tpu.matmul %11, %12, %cst_8 {dimension_numbers = #tpu.dot_dimension_numbers<[1], [0], [0], [1], [0, 0, 1, 1], [], []>} : vector<8x128xbf16>, vector<128x64xbf16>, vector<8x64xf32> -> vector<8x64xf32>
    %14 = arith.addf %10, %13 : vector<8x64xf32>
    %c0_9 = arith.constant 0 : index
    %c0_10 = arith.constant 0 : index
    %15 = vector.load %arg13[%c0_9, %c0_10] : memref<8x64xf32, #tpu.memory_space<vmem>>, vector<8x64xf32>
    tpu.vector_store %arg13[%c0_9, %c0_10], %14 {strides = array<i32>} : memref<8x64xf32, #tpu.memory_space<vmem>>, vector<8x64xf32>,
    %c0_i32_11 = arith.constant 0 : i32
    %16 = arith.cmpi eq, %arg0, %c0_i32_11 : i32
    %17 = arith.extui %16 : i1 to i32
    %c0_i32_12 = arith.constant 0 : i32
    %18 = arith.cmpi ne, %17, %c0_i32_12 : i32
    scf.if %18 {
      %c0_13 = arith.constant 0 : index
      %c0_14 = arith.constant 0 : index
      %19 = vector.load %arg13[%c0_13, %c0_14] : memref<8x64xf32, #tpu.memory_space<vmem>>, vector<8x64xf32>
      %c0_15 = arith.constant 0 : index
      %c0_16 = arith.constant 0 : index
      %20 = vector.load %arg7[%c0_15, %c0_16] : memref<1x64xf32, #tpu.memory_space<vmem>>, vector<1x64xf32>
      %c0_17 = arith.constant 0 : index
      %c0_18 = arith.constant 0 : index
      %21 = vector.load %arg8[%c0_17, %c0_18] : memref<1x64xf32, #tpu.memory_space<vmem>>, vector<1x64xf32>
      %cst_19 = arith.constant dense<0.000000e+00> : vector<64xf32>
      %22 = vector.multi_reduction <add>, %19, %cst_19 [0] : vector<8x64xf32> to vector<64xf32>
      %23 = vector.shape_cast %22 : vector<64xf32> to vector<1x64xf32>
      %cst_20 = arith.constant 8.000000e+00 : f32
      %24 = vector.broadcast %cst_20 : f32 to vector<1x64xf32>
      %25 = arith.divf %23, %24 : vector<1x64xf32>
      %26 = vector.broadcast %25 : vector<1x64xf32> to vector<8x64xf32>
      %27 = arith.subf %19, %26 : vector<8x64xf32>
      %28 = arith.mulf %27, %27 : vector<8x64xf32>
      %cst_21 = arith.constant dense<0.000000e+00> : vector<64xf32>
      %29 = vector.multi_reduction <add>, %28, %cst_21 [0] : vector<8x64xf32> to vector<64xf32>
      %30 = vector.shape_cast %29 : vector<64xf32> to vector<1x64xf32>
      %cst_22 = arith.constant 8.000000e+00 : f32
      %31 = vector.broadcast %cst_22 : f32 to vector<1x64xf32>
      %32 = arith.divf %30, %31 : vector<1x64xf32>
      %33 = vector.broadcast %25 : vector<1x64xf32> to vector<8x64xf32>
      %34 = arith.subf %19, %33 : vector<8x64xf32>
      %cst_23 = arith.constant 9.99999974E-6 : f32
      %35 = vector.broadcast %cst_23 : f32 to vector<1x64xf32>
      %36 = arith.addf %32, %35 : vector<1x64xf32>
      %37 = math.rsqrt %36 : vector<1x64xf32>
      %38 = vector.broadcast %37 : vector<1x64xf32> to vector<8x64xf32>
      %39 = arith.mulf %34, %38 : vector<8x64xf32>
      %40 = vector.broadcast %20 : vector<1x64xf32> to vector<8x64xf32>
      %41 = arith.mulf %39, %40 : vector<8x64xf32>
      %42 = vector.broadcast %21 : vector<1x64xf32> to vector<8x64xf32>
      %43 = arith.addf %41, %42 : vector<8x64xf32>
      %cst_24 = arith.constant 0.000000e+00 : f32
      %44 = vector.broadcast %cst_24 : f32 to vector<8x64xf32>
      %45 = arith.cmpf ogt, %43, %44 : vector<8x64xf32>
      %cst_25 = arith.constant 0.00999999977 : f32
      %46 = vector.broadcast %cst_25 : f32 to vector<8x64xf32>
      %47 = arith.mulf %46, %43 : vector<8x64xf32>
      %48 = arith.select %45, %43, %47 : vector<8x64xi1>, vector<8x64xf32>
      %c0_26 = arith.constant 0 : index
      %c0_27 = arith.constant 0 : index
      %49 = vector.load %arg11[%c0_26, %c0_27] : memref<8x64xf32, #tpu.memory_space<vmem>>, vector<8x64xf32>
      tpu.vector_store %arg11[%c0_26, %c0_27], %48 {strides = array<i32>} : memref<8x64xf32, #tpu.memory_space<vmem>>, vector<8x64xf32>,
      %50 = arith.truncf %48 : vector<8x64xf32> to vector<8x64xbf16>
      %c0_28 = arith.constant 0 : index
      %c0_29 = arith.constant 0 : index
      %51 = vector.load %arg9[%c0_28, %c0_29] : memref<64x22xbf16, #tpu.memory_space<vmem>>, vector<64x22xbf16>
      %cst_30 = arith.constant dense<0.000000e+00> : vector<8x22xf32>
      %52 = tpu.matmul %50, %51, %cst_30 {dimension_numbers = #tpu.dot_dimension_numbers<[1], [0], [0], [1], [0, 0, 1, 1], [], []>} : vector<8x64xbf16>, vector<64x22xbf16>, vector<8x22xf32> -> vector<8x22xf32>
      %c0_31 = arith.constant 0 : index
      %c0_32 = arith.constant 0 : index
      %53 = vector.load %arg10[%c0_31, %c0_32] : memref<1x22xf32, #tpu.memory_space<vmem>>, vector<1x22xf32>
      %54 = vector.broadcast %53 : vector<1x22xf32> to vector<8x22xf32>
      %55 = arith.addf %52, %54 : vector<8x22xf32>
      %c0_33 = arith.constant 0 : index
      %c0_34 = arith.constant 0 : index
      %56 = vector.load %arg12[%c0_33, %c0_34] : memref<8x22xf32, #tpu.memory_space<vmem>>, vector<8x22xf32>
      tpu.vector_store %arg12[%c0_33, %c0_34], %55 {strides = array<i32>} : memref<8x22xf32, #tpu.memory_space<vmem>>, vector<8x22xf32>,
    } else {
    }
    return
  }
  func.func @transform_0(%arg0: i32) -> (i32, i32) {
    %c0_i32 = arith.constant 0 : i32
    %c0_i32_0 = arith.constant 0 : i32
    return %c0_i32, %arg0 : i32, i32
  }
  func.func @transform_1(%arg0: i32) -> (i32, i32) {
    %c0_i32 = arith.constant 0 : i32
    %c0_i32_0 = arith.constant 0 : i32
    %c0_i32_1 = arith.constant 0 : i32
    return %c0_i32, %c0_i32_0 : i32, i32
  }
  func.func @transform_2(%arg0: i32) -> (i32, i32) {
    %c0_i32 = arith.constant 0 : i32
    %c0_i32_0 = arith.constant 0 : i32
    %c0_i32_1 = arith.constant 0 : i32
    return %c0_i32, %c0_i32_0 : i32, i32
  }
  func.func @transform_3(%arg0: i32) -> (i32, i32) {
    %c0_i32 = arith.constant 0 : i32
    %c0_i32_0 = arith.constant 0 : i32
    return %arg0, %c0_i32 : i32, i32
  }
  func.func @transform_4(%arg0: i32) -> (i32, i32) {
    %c0_i32 = arith.constant 0 : i32
    %c0_i32_0 = arith.constant 0 : i32
    %c0_i32_1 = arith.constant 0 : i32
    return %c0_i32, %c0_i32_0 : i32, i32
  }
  func.func @transform_5(%arg0: i32) -> (i32, i32) {
    %c0_i32 = arith.constant 0 : i32
    %c0_i32_0 = arith.constant 0 : i32
    %c0_i32_1 = arith.constant 0 : i32
    return %c0_i32, %c0_i32_0 : i32, i32
  }
  func.func @transform_6(%arg0: i32) -> (i32, i32) {
    %c0_i32 = arith.constant 0 : i32
    %c0_i32_0 = arith.constant 0 : i32
    %c0_i32_1 = arith.constant 0 : i32
    return %c0_i32, %c0_i32_0 : i32, i32
  }
  func.func @transform_7(%arg0: i32) -> (i32, i32) {
    %c0_i32 = arith.constant 0 : i32
    %c0_i32_0 = arith.constant 0 : i32
    %c0_i32_1 = arith.constant 0 : i32
    return %c0_i32, %c0_i32_0 : i32, i32
  }
  func.func @transform_8(%arg0: i32) -> (i32, i32) {
    %c0_i32 = arith.constant 0 : i32
    %c0_i32_0 = arith.constant 0 : i32
    %c0_i32_1 = arith.constant 0 : i32
    return %c0_i32, %c0_i32_0 : i32, i32
  }
  func.func @transform_9(%arg0: i32) -> (i32, i32) {
    %c0_i32 = arith.constant 0 : i32
    %c0_i32_0 = arith.constant 0 : i32
    %c0_i32_1 = arith.constant 0 : i32
    return %c0_i32, %c0_i32_0 : i32, i32
  }
  func.func @transform_10(%arg0: i32) -> (i32, i32) {
    %c0_i32 = arith.constant 0 : i32
    %c0_i32_0 = arith.constant 0 : i32
    %c0_i32_1 = arith.constant 0 : i32
    return %c0_i32, %c0_i32_0 : i32, i32
  }
  func.func @transform_11(%arg0: i32) -> (i32, i32) {
    %c0_i32 = arith.constant 0 : i32
    %c0_i32_0 = arith.constant 0 : i32
    %c0_i32_1 = arith.constant 0 : i32
    return %c0_i32, %c0_i32_0 : i32, i32
  }
}

module attributes {stable_mosaic.version = 11 : i64} {
  func.func @_predictor_group_kernel(%arg0: memref<8x32xf32, #tpu.memory_space<vmem>>, %arg1: memref<32x96xbf16, #tpu.memory_space<vmem>>, %arg2: memref<1x96xf32, #tpu.memory_space<vmem>>, %arg3: memref<1x96xf32, #tpu.memory_space<vmem>>, %arg4: memref<1x96xf32, #tpu.memory_space<vmem>>, %arg5: memref<96x9xbf16, #tpu.memory_space<vmem>>, %arg6: memref<1x9xf32, #tpu.memory_space<vmem>>, %arg7: memref<1x9xf32, #tpu.memory_space<vmem>>, %arg8: memref<1x9xf32, #tpu.memory_space<vmem>>, %arg9: memref<8x9xf32, #tpu.memory_space<vmem>>) attributes {dimension_semantics = [], scalar_prefetch = 0 : i64, scratch_operands = 0 : i64, tpu.core_type = #tpu.core_type<tc>} {
    %c0 = arith.constant 0 : index
    %c0_0 = arith.constant 0 : index
    %0 = vector.load %arg0[%c0, %c0_0] : memref<8x32xf32, #tpu.memory_space<vmem>>, vector<8x32xf32>
    %1 = arith.truncf %0 : vector<8x32xf32> to vector<8x32xbf16>
    %c0_1 = arith.constant 0 : index
    %c0_2 = arith.constant 0 : index
    %2 = vector.load %arg1[%c0_1, %c0_2] : memref<32x96xbf16, #tpu.memory_space<vmem>>, vector<32x96xbf16>
    %cst = arith.constant dense<0.000000e+00> : vector<8x96xf32>
    %3 = tpu.matmul %1, %2, %cst {dimension_numbers = #tpu.dot_dimension_numbers<[1], [0], [0], [1], [0, 0, 1, 1], [], []>} : vector<8x32xbf16>, vector<32x96xbf16>, vector<8x96xf32> -> vector<8x96xf32>
    %c0_3 = arith.constant 0 : index
    %c0_4 = arith.constant 0 : index
    %4 = vector.load %arg2[%c0_3, %c0_4] : memref<1x96xf32, #tpu.memory_space<vmem>>, vector<1x96xf32>
    %5 = vector.broadcast %4 : vector<1x96xf32> to vector<8x96xf32>
    %6 = arith.addf %3, %5 : vector<8x96xf32>
    %c0_5 = arith.constant 0 : index
    %c0_6 = arith.constant 0 : index
    %7 = vector.load %arg3[%c0_5, %c0_6] : memref<1x96xf32, #tpu.memory_space<vmem>>, vector<1x96xf32>
    %c0_7 = arith.constant 0 : index
    %c0_8 = arith.constant 0 : index
    %8 = vector.load %arg4[%c0_7, %c0_8] : memref<1x96xf32, #tpu.memory_space<vmem>>, vector<1x96xf32>
    %cst_9 = arith.constant dense<0.000000e+00> : vector<96xf32>
    %9 = vector.multi_reduction <add>, %6, %cst_9 [0] : vector<8x96xf32> to vector<96xf32>
    %10 = vector.shape_cast %9 : vector<96xf32> to vector<1x96xf32>
    %cst_10 = arith.constant 8.000000e+00 : f32
    %11 = vector.broadcast %cst_10 : f32 to vector<1x96xf32>
    %12 = arith.divf %10, %11 : vector<1x96xf32>
    %13 = vector.broadcast %12 : vector<1x96xf32> to vector<8x96xf32>
    %14 = arith.subf %6, %13 : vector<8x96xf32>
    %15 = arith.mulf %14, %14 : vector<8x96xf32>
    %cst_11 = arith.constant dense<0.000000e+00> : vector<96xf32>
    %16 = vector.multi_reduction <add>, %15, %cst_11 [0] : vector<8x96xf32> to vector<96xf32>
    %17 = vector.shape_cast %16 : vector<96xf32> to vector<1x96xf32>
    %cst_12 = arith.constant 8.000000e+00 : f32
    %18 = vector.broadcast %cst_12 : f32 to vector<1x96xf32>
    %19 = arith.divf %17, %18 : vector<1x96xf32>
    %20 = vector.broadcast %12 : vector<1x96xf32> to vector<8x96xf32>
    %21 = arith.subf %6, %20 : vector<8x96xf32>
    %cst_13 = arith.constant 9.99999974E-6 : f32
    %22 = vector.broadcast %cst_13 : f32 to vector<1x96xf32>
    %23 = arith.addf %19, %22 : vector<1x96xf32>
    %24 = math.rsqrt %23 : vector<1x96xf32>
    %25 = vector.broadcast %24 : vector<1x96xf32> to vector<8x96xf32>
    %26 = arith.mulf %21, %25 : vector<8x96xf32>
    %27 = vector.broadcast %7 : vector<1x96xf32> to vector<8x96xf32>
    %28 = arith.mulf %26, %27 : vector<8x96xf32>
    %29 = vector.broadcast %8 : vector<1x96xf32> to vector<8x96xf32>
    %30 = arith.addf %28, %29 : vector<8x96xf32>
    %cst_14 = arith.constant 0.000000e+00 : f32
    %31 = vector.broadcast %cst_14 : f32 to vector<8x96xf32>
    %32 = arith.cmpf ogt, %30, %31 : vector<8x96xf32>
    %cst_15 = arith.constant 0.00999999977 : f32
    %33 = vector.broadcast %cst_15 : f32 to vector<8x96xf32>
    %34 = arith.mulf %33, %30 : vector<8x96xf32>
    %35 = arith.select %32, %30, %34 : vector<8x96xi1>, vector<8x96xf32>
    %36 = arith.truncf %35 : vector<8x96xf32> to vector<8x96xbf16>
    %c0_16 = arith.constant 0 : index
    %c0_17 = arith.constant 0 : index
    %37 = vector.load %arg5[%c0_16, %c0_17] : memref<96x9xbf16, #tpu.memory_space<vmem>>, vector<96x9xbf16>
    %cst_18 = arith.constant dense<0.000000e+00> : vector<8x9xf32>
    %38 = tpu.matmul %36, %37, %cst_18 {dimension_numbers = #tpu.dot_dimension_numbers<[1], [0], [0], [1], [0, 0, 1, 1], [], []>} : vector<8x96xbf16>, vector<96x9xbf16>, vector<8x9xf32> -> vector<8x9xf32>
    %c0_19 = arith.constant 0 : index
    %c0_20 = arith.constant 0 : index
    %39 = vector.load %arg6[%c0_19, %c0_20] : memref<1x9xf32, #tpu.memory_space<vmem>>, vector<1x9xf32>
    %40 = vector.broadcast %39 : vector<1x9xf32> to vector<8x9xf32>
    %41 = arith.addf %38, %40 : vector<8x9xf32>
    %c0_21 = arith.constant 0 : index
    %c0_22 = arith.constant 0 : index
    %42 = vector.load %arg7[%c0_21, %c0_22] : memref<1x9xf32, #tpu.memory_space<vmem>>, vector<1x9xf32>
    %c0_23 = arith.constant 0 : index
    %c0_24 = arith.constant 0 : index
    %43 = vector.load %arg8[%c0_23, %c0_24] : memref<1x9xf32, #tpu.memory_space<vmem>>, vector<1x9xf32>
    %cst_25 = arith.constant dense<0.000000e+00> : vector<9xf32>
    %44 = vector.multi_reduction <add>, %41, %cst_25 [0] : vector<8x9xf32> to vector<9xf32>
    %45 = vector.shape_cast %44 : vector<9xf32> to vector<1x9xf32>
    %cst_26 = arith.constant 8.000000e+00 : f32
    %46 = vector.broadcast %cst_26 : f32 to vector<1x9xf32>
    %47 = arith.divf %45, %46 : vector<1x9xf32>
    %48 = vector.broadcast %47 : vector<1x9xf32> to vector<8x9xf32>
    %49 = arith.subf %41, %48 : vector<8x9xf32>
    %50 = arith.mulf %49, %49 : vector<8x9xf32>
    %cst_27 = arith.constant dense<0.000000e+00> : vector<9xf32>
    %51 = vector.multi_reduction <add>, %50, %cst_27 [0] : vector<8x9xf32> to vector<9xf32>
    %52 = vector.shape_cast %51 : vector<9xf32> to vector<1x9xf32>
    %cst_28 = arith.constant 8.000000e+00 : f32
    %53 = vector.broadcast %cst_28 : f32 to vector<1x9xf32>
    %54 = arith.divf %52, %53 : vector<1x9xf32>
    %55 = vector.broadcast %47 : vector<1x9xf32> to vector<8x9xf32>
    %56 = arith.subf %41, %55 : vector<8x9xf32>
    %cst_29 = arith.constant 9.99999974E-6 : f32
    %57 = vector.broadcast %cst_29 : f32 to vector<1x9xf32>
    %58 = arith.addf %54, %57 : vector<1x9xf32>
    %59 = math.rsqrt %58 : vector<1x9xf32>
    %60 = vector.broadcast %59 : vector<1x9xf32> to vector<8x9xf32>
    %61 = arith.mulf %56, %60 : vector<8x9xf32>
    %62 = vector.broadcast %42 : vector<1x9xf32> to vector<8x9xf32>
    %63 = arith.mulf %61, %62 : vector<8x9xf32>
    %64 = vector.broadcast %43 : vector<1x9xf32> to vector<8x9xf32>
    %65 = arith.addf %63, %64 : vector<8x9xf32>
    %c0_30 = arith.constant 0 : index
    %c0_31 = arith.constant 0 : index
    %66 = vector.load %arg9[%c0_30, %c0_31] : memref<8x9xf32, #tpu.memory_space<vmem>>, vector<8x9xf32>
    tpu.vector_store %arg9[%c0_30, %c0_31], %65 {strides = array<i32>} : memref<8x9xf32, #tpu.memory_space<vmem>>, vector<8x9xf32>,
    return
  }
}

module attributes {stable_mosaic.version = 11 : i64} {
  func.func @_dec1_kernel(%arg0: memref<8x10xf32, #tpu.memory_space<vmem>>, %arg1: memref<8x9xf32, #tpu.memory_space<vmem>>, %arg2: memref<10x32xbf16, #tpu.memory_space<vmem>>, %arg3: memref<9x32xbf16, #tpu.memory_space<vmem>>, %arg4: memref<1x32xf32, #tpu.memory_space<vmem>>, %arg5: memref<1x32xf32, #tpu.memory_space<vmem>>, %arg6: memref<1x32xf32, #tpu.memory_space<vmem>>, %arg7: memref<8x32xf32, #tpu.memory_space<vmem>>) attributes {dimension_semantics = [], scalar_prefetch = 0 : i64, scratch_operands = 0 : i64, tpu.core_type = #tpu.core_type<tc>} {
    %c0 = arith.constant 0 : index
    %c0_0 = arith.constant 0 : index
    %0 = vector.load %arg0[%c0, %c0_0] : memref<8x10xf32, #tpu.memory_space<vmem>>, vector<8x10xf32>
    %1 = arith.truncf %0 : vector<8x10xf32> to vector<8x10xbf16>
    %c0_1 = arith.constant 0 : index
    %c0_2 = arith.constant 0 : index
    %2 = vector.load %arg2[%c0_1, %c0_2] : memref<10x32xbf16, #tpu.memory_space<vmem>>, vector<10x32xbf16>
    %cst = arith.constant dense<0.000000e+00> : vector<8x32xf32>
    %3 = tpu.matmul %1, %2, %cst {dimension_numbers = #tpu.dot_dimension_numbers<[1], [0], [0], [1], [0, 0, 1, 1], [], []>} : vector<8x10xbf16>, vector<10x32xbf16>, vector<8x32xf32> -> vector<8x32xf32>
    %c0_3 = arith.constant 0 : index
    %c0_4 = arith.constant 0 : index
    %4 = vector.load %arg1[%c0_3, %c0_4] : memref<8x9xf32, #tpu.memory_space<vmem>>, vector<8x9xf32>
    %5 = arith.truncf %4 : vector<8x9xf32> to vector<8x9xbf16>
    %c0_5 = arith.constant 0 : index
    %c0_6 = arith.constant 0 : index
    %6 = vector.load %arg3[%c0_5, %c0_6] : memref<9x32xbf16, #tpu.memory_space<vmem>>, vector<9x32xbf16>
    %cst_7 = arith.constant dense<0.000000e+00> : vector<8x32xf32>
    %7 = tpu.matmul %5, %6, %cst_7 {dimension_numbers = #tpu.dot_dimension_numbers<[1], [0], [0], [1], [0, 0, 1, 1], [], []>} : vector<8x9xbf16>, vector<9x32xbf16>, vector<8x32xf32> -> vector<8x32xf32>
    %8 = arith.addf %3, %7 : vector<8x32xf32>
    %c0_8 = arith.constant 0 : index
    %c0_9 = arith.constant 0 : index
    %9 = vector.load %arg4[%c0_8, %c0_9] : memref<1x32xf32, #tpu.memory_space<vmem>>, vector<1x32xf32>
    %10 = vector.broadcast %9 : vector<1x32xf32> to vector<8x32xf32>
    %11 = arith.addf %8, %10 : vector<8x32xf32>
    %c0_10 = arith.constant 0 : index
    %c0_11 = arith.constant 0 : index
    %12 = vector.load %arg5[%c0_10, %c0_11] : memref<1x32xf32, #tpu.memory_space<vmem>>, vector<1x32xf32>
    %c0_12 = arith.constant 0 : index
    %c0_13 = arith.constant 0 : index
    %13 = vector.load %arg6[%c0_12, %c0_13] : memref<1x32xf32, #tpu.memory_space<vmem>>, vector<1x32xf32>
    %cst_14 = arith.constant dense<0.000000e+00> : vector<32xf32>
    %14 = vector.multi_reduction <add>, %11, %cst_14 [0] : vector<8x32xf32> to vector<32xf32>
    %15 = vector.shape_cast %14 : vector<32xf32> to vector<1x32xf32>
    %cst_15 = arith.constant 8.000000e+00 : f32
    %16 = vector.broadcast %cst_15 : f32 to vector<1x32xf32>
    %17 = arith.divf %15, %16 : vector<1x32xf32>
    %18 = vector.broadcast %17 : vector<1x32xf32> to vector<8x32xf32>
    %19 = arith.subf %11, %18 : vector<8x32xf32>
    %20 = arith.mulf %19, %19 : vector<8x32xf32>
    %cst_16 = arith.constant dense<0.000000e+00> : vector<32xf32>
    %21 = vector.multi_reduction <add>, %20, %cst_16 [0] : vector<8x32xf32> to vector<32xf32>
    %22 = vector.shape_cast %21 : vector<32xf32> to vector<1x32xf32>
    %cst_17 = arith.constant 8.000000e+00 : f32
    %23 = vector.broadcast %cst_17 : f32 to vector<1x32xf32>
    %24 = arith.divf %22, %23 : vector<1x32xf32>
    %25 = vector.broadcast %17 : vector<1x32xf32> to vector<8x32xf32>
    %26 = arith.subf %11, %25 : vector<8x32xf32>
    %cst_18 = arith.constant 9.99999974E-6 : f32
    %27 = vector.broadcast %cst_18 : f32 to vector<1x32xf32>
    %28 = arith.addf %24, %27 : vector<1x32xf32>
    %29 = math.rsqrt %28 : vector<1x32xf32>
    %30 = vector.broadcast %29 : vector<1x32xf32> to vector<8x32xf32>
    %31 = arith.mulf %26, %30 : vector<8x32xf32>
    %32 = vector.broadcast %12 : vector<1x32xf32> to vector<8x32xf32>
    %33 = arith.mulf %31, %32 : vector<8x32xf32>
    %34 = vector.broadcast %13 : vector<1x32xf32> to vector<8x32xf32>
    %35 = arith.addf %33, %34 : vector<8x32xf32>
    %cst_19 = arith.constant 0.000000e+00 : f32
    %36 = vector.broadcast %cst_19 : f32 to vector<8x32xf32>
    %37 = arith.cmpf ogt, %35, %36 : vector<8x32xf32>
    %cst_20 = arith.constant 0.00999999977 : f32
    %38 = vector.broadcast %cst_20 : f32 to vector<8x32xf32>
    %39 = arith.mulf %38, %35 : vector<8x32xf32>
    %40 = arith.select %37, %35, %39 : vector<8x32xi1>, vector<8x32xf32>
    %c0_21 = arith.constant 0 : index
    %c0_22 = arith.constant 0 : index
    %41 = vector.load %arg7[%c0_21, %c0_22] : memref<8x32xf32, #tpu.memory_space<vmem>>, vector<8x32xf32>
    tpu.vector_store %arg7[%c0_21, %c0_22], %40 {strides = array<i32>} : memref<8x32xf32, #tpu.memory_space<vmem>>, vector<8x32xf32>,
    return
  }
}

module attributes {stable_mosaic.version = 11 : i64} {
  func.func @_scale_logits_cache_kernel(%arg0: i32, %arg1: i32, %arg2: memref<8x32xf32, #tpu.memory_space<vmem>>, %arg3: memref<32x128xbf16, #tpu.memory_space<vmem>>, %arg4: memref<1x128xf32, #tpu.memory_space<vmem>>, %arg5: memref<8x128xbf16, #tpu.memory_space<vmem>>, %arg6: memref<8x1xf32, #tpu.memory_space<vmem>>, %arg7: memref<8x1xf32, #tpu.memory_space<vmem>>, %arg8: memref<8x1xf32, #tpu.memory_space<vmem>>) attributes {dimension_semantics = [#tpu.dimension_semantics<parallel>, #tpu.dimension_semantics<arbitrary>], iteration_bounds = array<i64: 1, 1>, scalar_prefetch = 0 : i64, scratch_operands = 2 : i64, tpu.core_type = #tpu.core_type<tc>, window_params = [{transform_indices = @transform_0, window_bounds = array<i64: 8, 32>}, {transform_indices = @transform_1, window_bounds = array<i64: 32, 128>}, {transform_indices = @transform_2, window_bounds = array<i64: 1, 128>}, {transform_indices = @transform_3, window_bounds = array<i64: 8, 128>}, {transform_indices = @transform_4, window_bounds = array<i64: 8, 1>}]} {
    %c0 = arith.constant 0 : index
    %c0_0 = arith.constant 0 : index
    %0 = vector.load %arg2[%c0, %c0_0] : memref<8x32xf32, #tpu.memory_space<vmem>>, vector<8x32xf32>
    %1 = arith.truncf %0 : vector<8x32xf32> to vector<8x32xbf16>
    %c0_1 = arith.constant 0 : index
    %c0_2 = arith.constant 0 : index
    %2 = vector.load %arg3[%c0_1, %c0_2] : memref<32x128xbf16, #tpu.memory_space<vmem>>, vector<32x128xbf16>
    %cst = arith.constant dense<0.000000e+00> : vector<8x128xf32>
    %3 = tpu.matmul %1, %2, %cst {dimension_numbers = #tpu.dot_dimension_numbers<[1], [0], [0], [1], [0, 0, 1, 1], [], []>} : vector<8x32xbf16>, vector<32x128xbf16>, vector<8x128xf32> -> vector<8x128xf32>
    %c0_3 = arith.constant 0 : index
    %c0_4 = arith.constant 0 : index
    %4 = vector.load %arg4[%c0_3, %c0_4] : memref<1x128xf32, #tpu.memory_space<vmem>>, vector<1x128xf32>
    %5 = vector.broadcast %4 : vector<1x128xf32> to vector<8x128xf32>
    %6 = arith.addf %3, %5 : vector<8x128xf32>
    %7 = arith.truncf %6 : vector<8x128xf32> to vector<8x128xbf16>
    %c0_5 = arith.constant 0 : index
    %c0_6 = arith.constant 0 : index
    %8 = vector.load %arg5[%c0_5, %c0_6] : memref<8x128xbf16, #tpu.memory_space<vmem>>, vector<8x128xbf16>
    tpu.vector_store %arg5[%c0_5, %c0_6], %7 {strides = array<i32>} : memref<8x128xbf16, #tpu.memory_space<vmem>>, vector<8x128xbf16>,
    %c0_i32 = arith.constant 0 : i32
    %9 = arith.cmpi eq, %arg1, %c0_i32 : i32
    %10 = arith.extui %9 : i1 to i32
    %c0_i32_7 = arith.constant 0 : i32
    %11 = arith.cmpi ne, %10, %c0_i32_7 : i32
    scf.if %11 {
      %cst_22 = arith.constant -1.000000e+30 : f32
      %32 = vector.broadcast %cst_22 : f32 to vector<8x1xf32>
      %c0_23 = arith.constant 0 : index
      %c0_24 = arith.constant 0 : index
      %33 = vector.load %arg7[%c0_23, %c0_24] : memref<8x1xf32, #tpu.memory_space<vmem>>, vector<8x1xf32>
      tpu.vector_store %arg7[%c0_23, %c0_24], %32 {strides = array<i32>} : memref<8x1xf32, #tpu.memory_space<vmem>>, vector<8x1xf32>,
      %cst_25 = arith.constant 0.000000e+00 : f32
      %34 = vector.broadcast %cst_25 : f32 to vector<8x1xf32>
      %c0_26 = arith.constant 0 : index
      %c0_27 = arith.constant 0 : index
      %35 = vector.load %arg8[%c0_26, %c0_27] : memref<8x1xf32, #tpu.memory_space<vmem>>, vector<8x1xf32>
      tpu.vector_store %arg8[%c0_26, %c0_27], %34 {strides = array<i32>} : memref<8x1xf32, #tpu.memory_space<vmem>>, vector<8x1xf32>,
    } else {
    }
    %c0_8 = arith.constant 0 : index
    %c0_9 = arith.constant 0 : index
    %12 = vector.load %arg7[%c0_8, %c0_9] : memref<8x1xf32, #tpu.memory_space<vmem>>, vector<8x1xf32>
    %cst_10 = arith.constant dense<0xFF800000> : vector<8xf32>
    %13 = vector.multi_reduction <maximumf>, %6, %cst_10 [1] : vector<8x128xf32> to vector<8xf32>
    %14 = vector.shape_cast %13 : vector<8xf32> to vector<8x1xf32>
    %15 = arith.maximumf %12, %14 : vector<8x1xf32>
    %c0_11 = arith.constant 0 : index
    %c0_12 = arith.constant 0 : index
    %16 = vector.load %arg7[%c0_11, %c0_12] : memref<8x1xf32, #tpu.memory_space<vmem>>, vector<8x1xf32>
    %17 = arith.subf %16, %15 : vector<8x1xf32>
    %18 = math.exp %17 : vector<8x1xf32>
    %c0_13 = arith.constant 0 : index
    %c0_14 = arith.constant 0 : index
    %19 = vector.load %arg8[%c0_13, %c0_14] : memref<8x1xf32, #tpu.memory_space<vmem>>, vector<8x1xf32>
    %20 = arith.mulf %18, %19 : vector<8x1xf32>
    %21 = vector.broadcast %15 : vector<8x1xf32> to vector<8x128xf32>
    %22 = arith.subf %6, %21 : vector<8x128xf32>
    %23 = math.exp %22 : vector<8x128xf32>
    %cst_15 = arith.constant dense<0.000000e+00> : vector<8xf32>
    %24 = vector.multi_reduction <add>, %23, %cst_15 [1] : vector<8x128xf32> to vector<8xf32>
    %25 = vector.shape_cast %24 : vector<8xf32> to vector<8x1xf32>
    %26 = arith.addf %20, %25 : vector<8x1xf32>
    %c0_16 = arith.constant 0 : index
    %c0_17 = arith.constant 0 : index
    %27 = vector.load %arg8[%c0_16, %c0_17] : memref<8x1xf32, #tpu.memory_space<vmem>>, vector<8x1xf32>
    tpu.vector_store %arg8[%c0_16, %c0_17], %26 {strides = array<i32>} : memref<8x1xf32, #tpu.memory_space<vmem>>, vector<8x1xf32>,
    %c0_18 = arith.constant 0 : index
    %c0_19 = arith.constant 0 : index
    %28 = vector.load %arg7[%c0_18, %c0_19] : memref<8x1xf32, #tpu.memory_space<vmem>>, vector<8x1xf32>
    tpu.vector_store %arg7[%c0_18, %c0_19], %15 {strides = array<i32>} : memref<8x1xf32, #tpu.memory_space<vmem>>, vector<8x1xf32>,
    %c0_i32_20 = arith.constant 0 : i32
    %29 = arith.cmpi eq, %arg1, %c0_i32_20 : i32
    %30 = arith.extui %29 : i1 to i32
    %c0_i32_21 = arith.constant 0 : i32
    %31 = arith.cmpi ne, %30, %c0_i32_21 : i32
    scf.if %31 {
      %c0_22 = arith.constant 0 : index
      %c0_23 = arith.constant 0 : index
      %32 = vector.load %arg7[%c0_22, %c0_23] : memref<8x1xf32, #tpu.memory_space<vmem>>, vector<8x1xf32>
      %c0_24 = arith.constant 0 : index
      %c0_25 = arith.constant 0 : index
      %33 = vector.load %arg8[%c0_24, %c0_25] : memref<8x1xf32, #tpu.memory_space<vmem>>, vector<8x1xf32>
      %34 = math.log %33 : vector<8x1xf32>
      %35 = arith.addf %32, %34 : vector<8x1xf32>
      %c0_26 = arith.constant 0 : index
      %c0_27 = arith.constant 0 : index
      %36 = vector.load %arg6[%c0_26, %c0_27] : memref<8x1xf32, #tpu.memory_space<vmem>>, vector<8x1xf32>
      tpu.vector_store %arg6[%c0_26, %c0_27], %35 {strides = array<i32>} : memref<8x1xf32, #tpu.memory_space<vmem>>, vector<8x1xf32>,
    } else {
    }
    return
  }
  func.func @transform_0(%arg0: i32, %arg1: i32) -> (i32, i32) {
    %c0_i32 = arith.constant 0 : i32
    %c0_i32_0 = arith.constant 0 : i32
    return %arg0, %c0_i32 : i32, i32
  }
  func.func @transform_1(%arg0: i32, %arg1: i32) -> (i32, i32) {
    %c0_i32 = arith.constant 0 : i32
    %c0_i32_0 = arith.constant 0 : i32
    return %c0_i32, %arg1 : i32, i32
  }
  func.func @transform_2(%arg0: i32, %arg1: i32) -> (i32, i32) {
    %c0_i32 = arith.constant 0 : i32
    %c0_i32_0 = arith.constant 0 : i32
    return %c0_i32, %arg1 : i32, i32
  }
  func.func @transform_3(%arg0: i32, %arg1: i32) -> (i32, i32) {
    %c0_i32 = arith.constant 0 : i32
    return %arg0, %arg1 : i32, i32
  }
  func.func @transform_4(%arg0: i32, %arg1: i32) -> (i32, i32) {
    %c0_i32 = arith.constant 0 : i32
    %c0_i32_0 = arith.constant 0 : i32
    return %arg0, %c0_i32 : i32, i32
  }
}

module attributes {stable_mosaic.version = 11 : i64} {
  func.func @_gen_tail_cached_kernel(%arg0: i32, %arg1: i32, %arg2: memref<8x32xf32, #tpu.memory_space<vmem>>, %arg3: memref<8x128xbf16, #tpu.memory_space<vmem>>, %arg4: memref<32x128xbf16, #tpu.memory_space<vmem>>, %arg5: memref<1x128xf32, #tpu.memory_space<vmem>>, %arg6: memref<8x1xf32, #tpu.memory_space<vmem>>, %arg7: memref<8x1xf32, #tpu.memory_space<vmem>>, %arg8: memref<8x128xf32, #tpu.memory_space<vmem>>, %arg9: memref<1x128xf32, #tpu.memory_space<vmem>>, %arg10: memref<1x128xf32, #tpu.memory_space<vmem>>, %arg11: memref<1x128xf32, #tpu.memory_space<vmem>>, %arg12: memref<8x128xbf16, #tpu.memory_space<vmem>>, %arg13: memref<8x128xbf16, #tpu.memory_space<vmem>>, %arg14: memref<8x128xbf16, #tpu.memory_space<vmem>>, %arg15: memref<8x128xbf16, #tpu.memory_space<vmem>>, %arg16: memref<8x1xf32, #tpu.memory_space<vmem>>) attributes {dimension_semantics = [#tpu.dimension_semantics<parallel>, #tpu.dimension_semantics<arbitrary>], iteration_bounds = array<i64: 1, 1>, scalar_prefetch = 0 : i64, scratch_operands = 0 : i64, tpu.core_type = #tpu.core_type<tc>, window_params = [{transform_indices = @transform_0, window_bounds = array<i64: 8, 32>}, {transform_indices = @transform_1, window_bounds = array<i64: 8, 128>}, {transform_indices = @transform_2, window_bounds = array<i64: 32, 128>}, {transform_indices = @transform_3, window_bounds = array<i64: 1, 128>}, {transform_indices = @transform_4, window_bounds = array<i64: 8, 1>}, {transform_indices = @transform_5, window_bounds = array<i64: 8, 1>}, {transform_indices = @transform_6, window_bounds = array<i64: 8, 128>}, {transform_indices = @transform_7, window_bounds = array<i64: 1, 128>}, {transform_indices = @transform_8, window_bounds = array<i64: 1, 128>}, {transform_indices = @transform_9, window_bounds = array<i64: 1, 128>}, {transform_indices = @transform_10, window_bounds = array<i64: 8, 128>}, {transform_indices = @transform_11, window_bounds = array<i64: 8, 128>}, {transform_indices = @transform_12, window_bounds = array<i64: 8, 128>}, {transform_indices = @transform_13, window_bounds = array<i64: 8, 128>}, {transform_indices = @transform_14, window_bounds = array<i64: 8, 1>}]} {
    %c0 = arith.constant 0 : index
    %c0_0 = arith.constant 0 : index
    %0 = vector.load %arg3[%c0, %c0_0] : memref<8x128xbf16, #tpu.memory_space<vmem>>, vector<8x128xbf16>
    %1 = arith.extf %0 : vector<8x128xbf16> to vector<8x128xf32>
    %c0_1 = arith.constant 0 : index
    %c0_2 = arith.constant 0 : index
    %2 = vector.load %arg2[%c0_1, %c0_2] : memref<8x32xf32, #tpu.memory_space<vmem>>, vector<8x32xf32>
    %3 = arith.truncf %2 : vector<8x32xf32> to vector<8x32xbf16>
    %c0_3 = arith.constant 0 : index
    %c0_4 = arith.constant 0 : index
    %4 = vector.load %arg4[%c0_3, %c0_4] : memref<32x128xbf16, #tpu.memory_space<vmem>>, vector<32x128xbf16>
    %cst = arith.constant dense<0.000000e+00> : vector<8x128xf32>
    %5 = tpu.matmul %3, %4, %cst {dimension_numbers = #tpu.dot_dimension_numbers<[1], [0], [0], [1], [0, 0, 1, 1], [], []>} : vector<8x32xbf16>, vector<32x128xbf16>, vector<8x128xf32> -> vector<8x128xf32>
    %c0_5 = arith.constant 0 : index
    %c0_6 = arith.constant 0 : index
    %6 = vector.load %arg5[%c0_5, %c0_6] : memref<1x128xf32, #tpu.memory_space<vmem>>, vector<1x128xf32>
    %7 = vector.broadcast %6 : vector<1x128xf32> to vector<8x128xf32>
    %8 = arith.addf %5, %7 : vector<8x128xf32>
    %c0_7 = arith.constant 0 : index
    %c0_8 = arith.constant 0 : index
    %9 = vector.load %arg6[%c0_7, %c0_8] : memref<8x1xf32, #tpu.memory_space<vmem>>, vector<8x1xf32>
    %c0_9 = arith.constant 0 : index
    %c0_10 = arith.constant 0 : index
    %10 = vector.load %arg7[%c0_9, %c0_10] : memref<8x1xf32, #tpu.memory_space<vmem>>, vector<8x1xf32>
    %c0_11 = arith.constant 0 : index
    %c0_12 = arith.constant 0 : index
    %11 = vector.load %arg8[%c0_11, %c0_12] : memref<8x128xf32, #tpu.memory_space<vmem>>, vector<8x128xf32>
    %c0_13 = arith.constant 0 : index
    %c0_14 = arith.constant 0 : index
    %12 = vector.load %arg9[%c0_13, %c0_14] : memref<1x128xf32, #tpu.memory_space<vmem>>, vector<1x128xf32>
    %c0_15 = arith.constant 0 : index
    %c0_16 = arith.constant 0 : index
    %13 = vector.load %arg10[%c0_15, %c0_16] : memref<1x128xf32, #tpu.memory_space<vmem>>, vector<1x128xf32>
    %c0_17 = arith.constant 0 : index
    %c0_18 = arith.constant 0 : index
    %14 = vector.load %arg11[%c0_17, %c0_18] : memref<1x128xf32, #tpu.memory_space<vmem>>, vector<1x128xf32>
    %c0_19 = arith.constant 0 : index
    %c0_20 = arith.constant 0 : index
    %15 = vector.load %arg12[%c0_19, %c0_20] : memref<8x128xbf16, #tpu.memory_space<vmem>>, vector<8x128xbf16>
    %16 = arith.extf %15 : vector<8x128xbf16> to vector<8x128xf32>
    %17 = vector.broadcast %9 : vector<8x1xf32> to vector<8x128xf32>
    %18 = arith.subf %1, %17 : vector<8x128xf32>
    %19 = math.exp %18 : vector<8x128xf32>
    %20 = math.exp %10 : vector<8x1xf32>
    %21 = vector.broadcast %20 : vector<8x1xf32> to vector<8x128xf32>
    %22 = arith.mulf %19, %21 : vector<8x128xf32>
    %23 = arith.subf %10, %9 : vector<8x1xf32>
    %24 = vector.broadcast %23 : vector<8x1xf32> to vector<8x128xf32>
    %25 = arith.addf %24, %1 : vector<8x128xf32>
    %cst_21 = arith.constant 0.000000e+00 : f32
    %26 = vector.broadcast %cst_21 : f32 to vector<8x128xf32>
    %27 = arith.subf %26, %8 : vector<8x128xf32>
    %cst_22 = arith.constant 0.000000e+00 : f32
    %28 = vector.broadcast %cst_22 : f32 to vector<8x128xf32>
    %29 = arith.maximumf %27, %28 : vector<8x128xf32>
    %30 = math.absf %27 : vector<8x128xf32>
    %cst_23 = arith.constant 0.000000e+00 : f32
    %31 = vector.broadcast %cst_23 : f32 to vector<8x128xf32>
    %32 = arith.subf %31, %30 : vector<8x128xf32>
    %33 = math.exp %32 : vector<8x128xf32>
    %cst_24 = arith.constant 1.000000e+00 : f32
    %34 = vector.broadcast %cst_24 : f32 to vector<8x128xf32>
    %35 = arith.addf %34, %33 : vector<8x128xf32>
    %36 = math.log %35 : vector<8x128xf32>
    %37 = arith.addf %29, %36 : vector<8x128xf32>
    %38 = vector.broadcast %12 : vector<1x128xf32> to vector<8x128xf32>
    %39 = arith.addf %38, %22 : vector<8x128xf32>
    %cst_25 = arith.constant 9.99999993E-9 : f32
    %40 = vector.broadcast %cst_25 : f32 to vector<8x128xf32>
    %41 = arith.addf %39, %40 : vector<8x128xf32>
    %42 = math.log %41 : vector<8x128xf32>
    %cst_26 = arith.constant 0.000000e+00 : f32
    %43 = vector.broadcast %cst_26 : f32 to vector<8x128xf32>
    %44 = arith.subf %43, %8 : vector<8x128xf32>
    %45 = vector.broadcast %13 : vector<1x128xf32> to vector<8x128xf32>
    %46 = arith.subf %45, %42 : vector<8x128xf32>
    %47 = vector.broadcast %12 : vector<1x128xf32> to vector<8x128xf32>
    %48 = arith.mulf %47, %46 : vector<8x128xf32>
    %49 = arith.addf %44, %48 : vector<8x128xf32>
    %cst_27 = arith.constant 0.000000e+00 : f32
    %50 = vector.broadcast %cst_27 : f32 to vector<8x128xf32>
    %51 = arith.maximumf %49, %50 : vector<8x128xf32>
    %52 = math.absf %49 : vector<8x128xf32>
    %cst_28 = arith.constant 0.000000e+00 : f32
    %53 = vector.broadcast %cst_28 : f32 to vector<8x128xf32>
    %54 = arith.subf %53, %52 : vector<8x128xf32>
    %55 = math.exp %54 : vector<8x128xf32>
    %cst_29 = arith.constant 1.000000e+00 : f32
    %56 = vector.broadcast %cst_29 : f32 to vector<8x128xf32>
    %57 = arith.addf %56, %55 : vector<8x128xf32>
    %58 = math.log %57 : vector<8x128xf32>
    %59 = arith.addf %51, %58 : vector<8x128xf32>
    %60 = arith.subf %59, %37 : vector<8x128xf32>
    %61 = vector.broadcast %12 : vector<1x128xf32> to vector<8x128xf32>
    %62 = arith.addf %11, %61 : vector<8x128xf32>
    %cst_30 = arith.constant 1.000000e+00 : f32
    %63 = vector.broadcast %cst_30 : f32 to vector<8x128xf32>
    %64 = arith.addf %62, %63 : vector<8x128xf32>
    %65 = arith.mulf %62, %64 : vector<8x128xf32>
    %cst_31 = arith.constant 2.000000e+00 : f32
    %66 = vector.broadcast %cst_31 : f32 to vector<8x128xf32>
    %67 = arith.addf %62, %66 : vector<8x128xf32>
    %68 = arith.mulf %65, %67 : vector<8x128xf32>
    %cst_32 = arith.constant 3.000000e+00 : f32
    %69 = vector.broadcast %cst_32 : f32 to vector<8x128xf32>
    %70 = arith.addf %62, %69 : vector<8x128xf32>
    %cst_33 = arith.constant 4.000000e+00 : f32
    %71 = vector.broadcast %cst_33 : f32 to vector<8x128xf32>
    %72 = arith.addf %62, %71 : vector<8x128xf32>
    %73 = arith.mulf %70, %72 : vector<8x128xf32>
    %cst_34 = arith.constant 5.000000e+00 : f32
    %74 = vector.broadcast %cst_34 : f32 to vector<8x128xf32>
    %75 = arith.addf %62, %74 : vector<8x128xf32>
    %76 = arith.mulf %73, %75 : vector<8x128xf32>
    %77 = math.log %68 : vector<8x128xf32>
    %78 = math.log %76 : vector<8x128xf32>
    %79 = arith.addf %77, %78 : vector<8x128xf32>
    %cst_35 = arith.constant 6.000000e+00 : f32
    %80 = vector.broadcast %cst_35 : f32 to vector<8x128xf32>
    %81 = arith.addf %62, %80 : vector<8x128xf32>
    %82 = tpu.reciprocal %81 {approx = true} : vector<8x128xf32> -> vector<8x128xf32>
    %83 = arith.mulf %82, %82 : vector<8x128xf32>
    %cst_36 = arith.constant 7.93650805E-4 : f32
    %84 = vector.broadcast %cst_36 : f32 to vector<8x128xf32>
    %85 = arith.mulf %83, %84 : vector<8x128xf32>
    %cst_37 = arith.constant 0.00277777785 : f32
    %86 = vector.broadcast %cst_37 : f32 to vector<8x128xf32>
    %87 = arith.subf %86, %85 : vector<8x128xf32>
    %88 = arith.mulf %83, %87 : vector<8x128xf32>
    %cst_38 = arith.constant 0.0833333358 : f32
    %89 = vector.broadcast %cst_38 : f32 to vector<8x128xf32>
    %90 = arith.subf %89, %88 : vector<8x128xf32>
    %91 = arith.mulf %82, %90 : vector<8x128xf32>
    %cst_39 = arith.constant 5.000000e-01 : f32
    %92 = vector.broadcast %cst_39 : f32 to vector<8x128xf32>
    %93 = arith.subf %81, %92 : vector<8x128xf32>
    %94 = math.log %81 : vector<8x128xf32>
    %95 = arith.mulf %93, %94 : vector<8x128xf32>
    %96 = arith.subf %95, %81 : vector<8x128xf32>
    %cst_40 = arith.constant 0.918938517 : f32
    %97 = vector.broadcast %cst_40 : f32 to vector<8x128xf32>
    %98 = arith.addf %96, %97 : vector<8x128xf32>
    %99 = arith.addf %98, %91 : vector<8x128xf32>
    %100 = arith.subf %99, %79 : vector<8x128xf32>
    %cst_41 = arith.constant 1.000000e+00 : f32
    %101 = vector.broadcast %cst_41 : f32 to vector<8x128xf32>
    %102 = arith.addf %11, %101 : vector<8x128xf32>
    %cst_42 = arith.constant 1.000000e+00 : f32
    %103 = vector.broadcast %cst_42 : f32 to vector<8x128xf32>
    %104 = arith.addf %102, %103 : vector<8x128xf32>
    %105 = arith.mulf %102, %104 : vector<8x128xf32>
    %cst_43 = arith.constant 2.000000e+00 : f32
    %106 = vector.broadcast %cst_43 : f32 to vector<8x128xf32>
    %107 = arith.addf %102, %106 : vector<8x128xf32>
    %108 = arith.mulf %105, %107 : vector<8x128xf32>
    %cst_44 = arith.constant 3.000000e+00 : f32
    %109 = vector.broadcast %cst_44 : f32 to vector<8x128xf32>
    %110 = arith.addf %102, %109 : vector<8x128xf32>
    %cst_45 = arith.constant 4.000000e+00 : f32
    %111 = vector.broadcast %cst_45 : f32 to vector<8x128xf32>
    %112 = arith.addf %102, %111 : vector<8x128xf32>
    %113 = arith.mulf %110, %112 : vector<8x128xf32>
    %cst_46 = arith.constant 5.000000e+00 : f32
    %114 = vector.broadcast %cst_46 : f32 to vector<8x128xf32>
    %115 = arith.addf %102, %114 : vector<8x128xf32>
    %116 = arith.mulf %113, %115 : vector<8x128xf32>
    %117 = math.log %108 : vector<8x128xf32>
    %118 = math.log %116 : vector<8x128xf32>
    %119 = arith.addf %117, %118 : vector<8x128xf32>
    %cst_47 = arith.constant 6.000000e+00 : f32
    %120 = vector.broadcast %cst_47 : f32 to vector<8x128xf32>
    %121 = arith.addf %102, %120 : vector<8x128xf32>
    %122 = tpu.reciprocal %121 {approx = true} : vector<8x128xf32> -> vector<8x128xf32>
    %123 = arith.mulf %122, %122 : vector<8x128xf32>
    %cst_48 = arith.constant 7.93650805E-4 : f32
    %124 = vector.broadcast %cst_48 : f32 to vector<8x128xf32>
    %125 = arith.mulf %123, %124 : vector<8x128xf32>
    %cst_49 = arith.constant 0.00277777785 : f32
    %126 = vector.broadcast %cst_49 : f32 to vector<8x128xf32>
    %127 = arith.subf %126, %125 : vector<8x128xf32>
    %128 = arith.mulf %123, %127 : vector<8x128xf32>
    %cst_50 = arith.constant 0.0833333358 : f32
    %129 = vector.broadcast %cst_50 : f32 to vector<8x128xf32>
    %130 = arith.subf %129, %128 : vector<8x128xf32>
    %131 = arith.mulf %122, %130 : vector<8x128xf32>
    %cst_51 = arith.constant 5.000000e-01 : f32
    %132 = vector.broadcast %cst_51 : f32 to vector<8x128xf32>
    %133 = arith.subf %121, %132 : vector<8x128xf32>
    %134 = math.log %121 : vector<8x128xf32>
    %135 = arith.mulf %133, %134 : vector<8x128xf32>
    %136 = arith.subf %135, %121 : vector<8x128xf32>
    %cst_52 = arith.constant 0.918938517 : f32
    %137 = vector.broadcast %cst_52 : f32 to vector<8x128xf32>
    %138 = arith.addf %136, %137 : vector<8x128xf32>
    %139 = arith.addf %138, %131 : vector<8x128xf32>
    %140 = arith.subf %139, %119 : vector<8x128xf32>
    %141 = arith.subf %100, %140 : vector<8x128xf32>
    %142 = vector.broadcast %14 : vector<1x128xf32> to vector<8x128xf32>
    %143 = arith.subf %141, %142 : vector<8x128xf32>
    %cst_53 = arith.constant 0.000000e+00 : f32
    %144 = vector.broadcast %cst_53 : f32 to vector<8x128xf32>
    %145 = arith.subf %144, %37 : vector<8x128xf32>
    %146 = arith.addf %145, %49 : vector<8x128xf32>
    %147 = arith.subf %25, %42 : vector<8x128xf32>
    %148 = arith.mulf %11, %147 : vector<8x128xf32>
    %149 = arith.addf %146, %148 : vector<8x128xf32>
    %150 = arith.addf %149, %143 : vector<8x128xf32>
    %cst_54 = arith.constant 9.99999993E-9 : f32
    %151 = vector.broadcast %cst_54 : f32 to vector<8x128xf32>
    %152 = arith.cmpf olt, %11, %151 : vector<8x128xf32>
    %153 = arith.select %152, %60, %150 : vector<8x128xi1>, vector<8x128xf32>
    %cst_55 = arith.constant 0.000000e+00 : f32
    %154 = vector.broadcast %cst_55 : f32 to vector<8x128xf32>
    %155 = arith.subf %154, %153 : vector<8x128xf32>
    %156 = arith.mulf %155, %16 : vector<8x128xf32>
    %cst_56 = arith.constant dense<0.000000e+00> : vector<8xf32>
    %157 = vector.multi_reduction <add>, %156, %cst_56 [1] : vector<8x128xf32> to vector<8xf32>
    %158 = vector.shape_cast %157 : vector<8xf32> to vector<8x1xf32>
    %159 = arith.truncf %19 : vector<8x128xf32> to vector<8x128xbf16>
    %c0_57 = arith.constant 0 : index
    %c0_58 = arith.constant 0 : index
    %160 = vector.load %arg13[%c0_57, %c0_58] : memref<8x128xbf16, #tpu.memory_space<vmem>>, vector<8x128xbf16>
    tpu.vector_store %arg13[%c0_57, %c0_58], %159 {strides = array<i32>} : memref<8x128xbf16, #tpu.memory_space<vmem>>, vector<8x128xbf16>,
    %161 = arith.truncf %22 : vector<8x128xf32> to vector<8x128xbf16>
    %c0_59 = arith.constant 0 : index
    %c0_60 = arith.constant 0 : index
    %162 = vector.load %arg14[%c0_59, %c0_60] : memref<8x128xbf16, #tpu.memory_space<vmem>>, vector<8x128xbf16>
    tpu.vector_store %arg14[%c0_59, %c0_60], %161 {strides = array<i32>} : memref<8x128xbf16, #tpu.memory_space<vmem>>, vector<8x128xbf16>,
    %163 = arith.truncf %8 : vector<8x128xf32> to vector<8x128xbf16>
    %c0_61 = arith.constant 0 : index
    %c0_62 = arith.constant 0 : index
    %164 = vector.load %arg15[%c0_61, %c0_62] : memref<8x128xbf16, #tpu.memory_space<vmem>>, vector<8x128xbf16>
    tpu.vector_store %arg15[%c0_61, %c0_62], %163 {strides = array<i32>} : memref<8x128xbf16, #tpu.memory_space<vmem>>, vector<8x128xbf16>,
    %c0_i32 = arith.constant 0 : i32
    %165 = arith.cmpi eq, %arg1, %c0_i32 : i32
    %166 = arith.extui %165 : i1 to i32
    %c0_i32_63 = arith.constant 0 : i32
    %167 = arith.cmpi ne, %166, %c0_i32_63 : i32
    scf.if %167 {
      %cst_68 = arith.constant 0.000000e+00 : f32
      %171 = vector.broadcast %cst_68 : f32 to vector<8x1xf32>
      %c0_69 = arith.constant 0 : index
      %c0_70 = arith.constant 0 : index
      %172 = vector.load %arg16[%c0_69, %c0_70] : memref<8x1xf32, #tpu.memory_space<vmem>>, vector<8x1xf32>
      tpu.vector_store %arg16[%c0_69, %c0_70], %171 {strides = array<i32>} : memref<8x1xf32, #tpu.memory_space<vmem>>, vector<8x1xf32>,
    } else {
    }
    %c0_64 = arith.constant 0 : index
    %c0_65 = arith.constant 0 : index
    %168 = vector.load %arg16[%c0_64, %c0_65] : memref<8x1xf32, #tpu.memory_space<vmem>>, vector<8x1xf32>
    %169 = arith.addf %168, %158 : vector<8x1xf32>
    %c0_66 = arith.constant 0 : index
    %c0_67 = arith.constant 0 : index
    %170 = vector.load %arg16[%c0_66, %c0_67] : memref<8x1xf32, #tpu.memory_space<vmem>>, vector<8x1xf32>
    tpu.vector_store %arg16[%c0_66, %c0_67], %169 {strides = array<i32>} : memref<8x1xf32, #tpu.memory_space<vmem>>, vector<8x1xf32>,
    return
  }
  func.func @transform_0(%arg0: i32, %arg1: i32) -> (i32, i32) {
    %c0_i32 = arith.constant 0 : i32
    %c0_i32_0 = arith.constant 0 : i32
    return %arg0, %c0_i32 : i32, i32
  }
  func.func @transform_1(%arg0: i32, %arg1: i32) -> (i32, i32) {
    %c0_i32 = arith.constant 0 : i32
    return %arg0, %arg1 : i32, i32
  }
  func.func @transform_2(%arg0: i32, %arg1: i32) -> (i32, i32) {
    %c0_i32 = arith.constant 0 : i32
    %c0_i32_0 = arith.constant 0 : i32
    return %c0_i32, %arg1 : i32, i32
  }
  func.func @transform_3(%arg0: i32, %arg1: i32) -> (i32, i32) {
    %c0_i32 = arith.constant 0 : i32
    %c0_i32_0 = arith.constant 0 : i32
    return %c0_i32, %arg1 : i32, i32
  }
  func.func @transform_4(%arg0: i32, %arg1: i32) -> (i32, i32) {
    %c0_i32 = arith.constant 0 : i32
    %c0_i32_0 = arith.constant 0 : i32
    return %arg0, %c0_i32 : i32, i32
  }
  func.func @transform_5(%arg0: i32, %arg1: i32) -> (i32, i32) {
    %c0_i32 = arith.constant 0 : i32
    %c0_i32_0 = arith.constant 0 : i32
    return %arg0, %c0_i32 : i32, i32
  }
  func.func @transform_6(%arg0: i32, %arg1: i32) -> (i32, i32) {
    %c0_i32 = arith.constant 0 : i32
    return %arg0, %arg1 : i32, i32
  }
  func.func @transform_7(%arg0: i32, %arg1: i32) -> (i32, i32) {
    %c0_i32 = arith.constant 0 : i32
    %c0_i32_0 = arith.constant 0 : i32
    return %c0_i32, %arg1 : i32, i32
  }
  func.func @transform_8(%arg0: i32, %arg1: i32) -> (i32, i32) {
    %c0_i32 = arith.constant 0 : i32
    %c0_i32_0 = arith.constant 0 : i32
    return %c0_i32, %arg1 : i32, i32
  }
  func.func @transform_9(%arg0: i32, %arg1: i32) -> (i32, i32) {
    %c0_i32 = arith.constant 0 : i32
    %c0_i32_0 = arith.constant 0 : i32
    return %c0_i32, %arg1 : i32, i32
  }
  func.func @transform_10(%arg0: i32, %arg1: i32) -> (i32, i32) {
    %c0_i32 = arith.constant 0 : i32
    return %arg0, %arg1 : i32, i32
  }
  func.func @transform_11(%arg0: i32, %arg1: i32) -> (i32, i32) {
    %c0_i32 = arith.constant 0 : i32
    return %arg0, %arg1 : i32, i32
  }
  func.func @transform_12(%arg0: i32, %arg1: i32) -> (i32, i32) {
    %c0_i32 = arith.constant 0 : i32
    return %arg0, %arg1 : i32, i32
  }
  func.func @transform_13(%arg0: i32, %arg1: i32) -> (i32, i32) {
    %c0_i32 = arith.constant 0 : i32
    return %arg0, %arg1 : i32, i32
  }
  func.func @transform_14(%arg0: i32, %arg1: i32) -> (i32, i32) {
    %c0_i32 = arith.constant 0 : i32
    %c0_i32_0 = arith.constant 0 : i32
    return %arg0, %c0_i32 : i32, i32
  }
}

</mosaic_0001>

<llo_original>
// kernel: bascvi_forward.7
$region0: #{bascvi_forward.7}
  #allocation0 [shape = 'u32[]', space=smem, size = 0x4, offset = 0x4, fixed_abs, tag = 'smem constant byte address 0x4 - core index']
  #allocation1 [shape = 'u32[144,128]{1,0:T(1,128)}', space=vmem, size = 0x12000, scoped, tag = 'internal scratch']
  %s0 = inlined_call_operand.vmem [shape: f32[8,32], index: 0, kind: input, shape index: {}]
  %s1 = inlined_call_operand.vmem [shape: bf16[32,96], index: 1, kind: input, shape index: {}]
  %s2 = inlined_call_operand.vmem [shape: f32[1,96], index: 2, kind: input, shape index: {}]
  %s3 = inlined_call_operand.vmem [shape: f32[1,96], index: 3, kind: input, shape index: {}]
  %s4 = inlined_call_operand.vmem [shape: f32[1,96], index: 4, kind: input, shape index: {}]
  %s5 = inlined_call_operand.vmem [shape: bf16[96,9], index: 5, kind: input, shape index: {}]
  %s6 = inlined_call_operand.vmem [shape: f32[1,9], index: 6, kind: input, shape index: {}]
  %s7 = inlined_call_operand.vmem [shape: f32[1,9], index: 7, kind: input, shape index: {}]
  %s8 = inlined_call_operand.vmem [shape: f32[1,9], index: 8, kind: input, shape index: {}]
  %s9 = inlined_call_operand.vmem [shape: f32[8,9], index: 9, kind: output, shape index: {}]
  %s10 = sld [smem:[#allocation0]]
  $region46: #{bascvi_forward.7} parent=0
    _
  %s12 = ssub.s32 1, %s10
  %s13 = scalar_select 0, %s12, %s10
  // Predicated region
  $region2: #{bascvi_forward.7} parent=0 // pred_check
    _
  $region3: #{bascvi_forward.7} parent=0 // pred_check_branch
    %15 = sbr.rel (0) target = $region5
  $region4: #{bascvi_forward.7} parent=0 // pred_region
    _
  $region5: #{bascvi_forward.7} parent=0 // pred_fallthru
    _
  // Predicated region
  $region6: #{bascvi_forward.7} parent=0 // pred_check
    _
  $region7: #{bascvi_forward.7} parent=0 // pred_check_branch
    %17 = sbr.rel (0) target = $region9
  $region8: #{bascvi_forward.7} parent=0 // pred_region
    _
  $region9: #{bascvi_forward.7} parent=0 // pred_fallthru
    _
  // Predicated region
  $region10: #{bascvi_forward.7} parent=0 // pred_check
    _
  $region11: #{bascvi_forward.7} parent=0 // pred_check_branch
    %19 = sbr.rel (0) target = $region13
  $region12: #{bascvi_forward.7} parent=0 // pred_region
    _
  $region13: #{bascvi_forward.7} parent=0 // pred_fallthru
    _
  // Predicated region
  $region14: #{bascvi_forward.7} parent=0 // pred_check
    _
  $region15: #{bascvi_forward.7} parent=0 // pred_check_branch
    %21 = sbr.rel (0) target = $region17
  $region16: #{bascvi_forward.7} parent=0 // pred_region
    _
  $region17: #{bascvi_forward.7} parent=0 // pred_fallthru
    _
  // Predicated region
  $region18: #{bascvi_forward.7} parent=0 // pred_check
    _
  $region19: #{bascvi_forward.7} parent=0 // pred_check_branch
    %23 = sbr.rel (0) target = $region21
  $region20: #{bascvi_forward.7} parent=0 // pred_region
    _
  $region21: #{bascvi_forward.7} parent=0 // pred_fallthru
    _
  // Predicated region
  $region22: #{bascvi_forward.7} parent=0 // pred_check
    _
  $region23: #{bascvi_forward.7} parent=0 // pred_check_branch
    %25 = sbr.rel (0) target = $region25
  $region24: #{bascvi_forward.7} parent=0 // pred_region
    _
  $region25: #{bascvi_forward.7} parent=0 // pred_fallthru
    _
  // Predicated region
  $region26: #{bascvi_forward.7} parent=0 // pred_check
    _
  $region27: #{bascvi_forward.7} parent=0 // pred_check_branch
    %27 = sbr.rel (0) target = $region29
  $region28: #{bascvi_forward.7} parent=0 // pred_region
    _
  $region29: #{bascvi_forward.7} parent=0 // pred_fallthru
    _
  // Predicated region
  $region30: #{bascvi_forward.7} parent=0 // pred_check
    _
  $region31: #{bascvi_forward.7} parent=0 // pred_check_branch
    %29 = sbr.rel (0) target = $region33
  $region32: #{bascvi_forward.7} parent=0 // pred_region
    _
  $region33: #{bascvi_forward.7} parent=0 // pred_fallthru
    _
  // Predicated region
  $region34: #{bascvi_forward.7} parent=0 // pred_check
    _
  $region35: #{bascvi_forward.7} parent=0 // pred_check_branch
    %31 = sbr.rel (0) target = $region37
  $region36: #{bascvi_forward.7} parent=0 // pred_region
    _
  $region37: #{bascvi_forward.7} parent=0 // pred_fallthru
    _
  %v33 = vld [vmem:[%s0] sm:$0xff]
  %v34 = vpack.c.bf16 %v33, %v33
  %v35 = vld [vmem:[%s1] sm:$0xf]
  %v36 = vld [vmem:[%s1 + $0x4] sm:$0xf]
  %v37 = vld [vmem:[%s1 + $0x8] sm:$0xf]
  %v38 = vld [vmem:[%s1 + $0xc] sm:$0xf]
  %v39 = vld [vmem:[%s2] sm:$0x1]
  %v41 = vlaneseq
  %v42 = vshrl.u32 %v41, 7
  %v43 = vsub.s32 0, %v42
  %v44 = vrot.slane %v39, %v43
  %v50 = vunpack.c.l.b16 %v35
  %v51 = vunpack.c.l.b16 %v36
  %v52 = vunpack.c.l.b16 %v37
  %v53 = vunpack.c.l.b16 %v38
  %v54 = vpack.c.b16 %v51, %v50
  %v55 = vpack.c.b16 %v53, %v52
  %vm58 = vcmask 261120
  %v60 = vsel %vm58, %v34, 0
  %62 = vmatprep.subr.bf16.mxu0 0
  %63 = vmatpush1.bf16.msra.mxu0 0
  %64 = vmatprep.subr.bf16.mxu0 0
  %65 = vmatpush1.bf16.msra.mxu0 0
  %66 = vmatprep.subr.bf16.mxu0 0
  %67 = vmatpush1.bf16.msra.mxu0 0
  %68 = vmatprep.subr.bf16.mxu0 0
  %69 = vmatpush1.bf16.msra.mxu0 0
  %70 = vmatprep.subr.bf16.mxu0 0
  %71 = vmatpush1.bf16.msra.mxu0 0
  %72 = vmatprep.subr.bf16.mxu0 0
  %73 = vmatpush1.bf16.msra.mxu0 0
  %74 = vmatprep.subr.bf16.mxu0 0
  %75 = vmatpush1.bf16.msra.mxu0 %v55
  %76 = vmatprep.subr.bf16.mxu0 0
  %77 = vmatpush1.bf16.msra.mxu0 %v54
  %78 = vmatprep.subr.bf16.mxu0 0
  %79 = vmatpush2.bf16.msra.mxu0 0
  %80 = vmatprep.subr.bf16.mxu0 0
  %81 = vmatpush2.bf16.msra.mxu0 0
  %82 = vmatprep.subr.bf16.mxu0 0
  %83 = vmatpush2.bf16.msra.mxu0 0
  %84 = vmatprep.subr.bf16.mxu0 0
  %85 = vmatpush2.bf16.msra.mxu0 0
  %86 = vmatprep.subr.bf16.mxu0 0
  %87 = vmatpush2.bf16.msra.mxu0 0
  %88 = vmatprep.subr.bf16.mxu0 0
  %89 = vmatpush2.bf16.msra.mxu0 0
  %90 = vmatprep.subr.bf16.mxu0 0
  %91 = vmatpush2.bf16.msra.mxu0 0
  %92 = vmatprep.subr.bf16.mxu0 0
  %93 = vmatpush2.bf16.msra.mxu0 0
  %94 = vmatprep.mubr.bf16.mxu0 0
  %95 = vmatmul.mubr.bf16.gmra.mxu0 %v60
  %v96 = vpop.f32.mrf.mxu0
  %v97 = vadd.f32 %v44, %v96
  %v98 = vpop.f32.mrf.mxu0
  %v99 = vpop.f32.mrf.mxu0
  %v100 = vpop.f32.mrf.mxu0
  %101 = vdwg.mxu0
  %v102 = vld [vmem:[%s3] sm:$0x1]
  %v103 = vld [vmem:[%s4] sm:$0x1]
  %vm104 = vcmask 785408
  %v105 = vsel %vm104, %v97, 0.0
  %v106 = vrot.slane %v105, 4
  %v107 = vadd.f32 %v105, %v106
  %v108 = vrot.slane %v107, 2
  %v109 = vadd.f32 %v107, %v108
  %v110 = vrot.slane %v109, 1
  %v111 = vadd.f32 %v109, %v110
  %v112 = vrcp.pop 8.0
  %v113 = vmul.f32 %v111, %v112
  %v114 = vsub.f32 %v97, %v113
  %v115 = vmul.f32 %v114, %v114
  %v116 = vsel %vm104, %v115, 0.0
  %v117 = vrot.slane %v116, 4
  %v118 = vadd.f32 %v116, %v117
  %v119 = vrot.slane %v118, 2
  %v120 = vadd.f32 %v118, %v119
  %v121 = vrot.slane %v120, 1
  %v122 = vadd.f32 %v120, %v121
  %v123 = vmul.f32 %v122, %v112
  %v124 = vadd.f32 %v123, 1e-05
  %v125 = vrsqrt.pop %v124
  %v126 = vmul.f32 %v114, %v125
  %v128 = vlaneseq
  %v129 = vshrl.u32 %v128, 7
  %v130 = vsub.s32 0, %v129
  %v131 = vrot.slane %v102, %v130
  %v133 = vmul.f32 %v126, %v131
  %v135 = vlaneseq
  %v136 = vshrl.u32 %v135, 7
  %v137 = vsub.s32 0, %v136
  %v138 = vrot.slane %v103, %v137
  %v140 = vadd.f32 %v133, %v138
  %vm141 = vcmp.gt.f32.partialorder %v140, 0.0
  %v142 = vmul.f32 %v140, 0.01
  %v143 = vsel %vm141, %v140, %v142
  %v144 = vpack.c.bf16 %v143, %v143
  %v145 = vld [vmem:[%s5] sm:$0xf]
  %v146 = vld [vmem:[%s5 + $0x4] sm:$0xf]
  %v147 = vld [vmem:[%s5 + $0x8] sm:$0xf]
  %v148 = vld [vmem:[%s5 + $0xc] sm:$0xf]
  %v149 = vld [vmem:[%s5 + $0x10] sm:$0xf]
  %v150 = vld [vmem:[%s5 + $0x14] sm:$0xf]
  %v151 = vld [vmem:[%s5 + $0x18] sm:$0xf]
  %v152 = vld [vmem:[%s5 + $0x1c] sm:$0xf]
  %v153 = vld [vmem:[%s5 + $0x20] sm:$0xf]
  %v154 = vld [vmem:[%s5 + $0x24] sm:$0xf]
  %v155 = vld [vmem:[%s5 + $0x28] sm:$0xf]
  %v156 = vld [vmem:[%s5 + $0x2c] sm:$0xf]
  %v157 = vld [vmem:[%s6] sm:$0x1]
  %v159 = vlaneseq
  %v160 = vshrl.u32 %v159, 7
  %v161 = vsub.s32 0, %v160
  %v162 = vrot.slane %v157, %v161
  %v176 = vunpack.c.l.b16 %v145
  %v177 = vunpack.c.l.b16 %v146
  %v178 = vunpack.c.l.b16 %v147
  %v179 = vunpack.c.l.b16 %v148
  %v180 = vunpack.c.l.b16 %v149
  %v181 = vunpack.c.l.b16 %v150
  %v182 = vunpack.c.l.b16 %v151
  %v183 = vunpack.c.l.b16 %v152
  %v184 = vunpack.c.l.b16 %v153
  %v185 = vunpack.c.l.b16 %v154
  %v186 = vunpack.c.l.b16 %v155
  %v187 = vunpack.c.l.b16 %v156
  %v188 = vpack.c.b16 %v177, %v176
  %v189 = vpack.c.b16 %v179, %v178
  %v190 = vpack.c.b16 %v181, %v180
  %v191 = vpack.c.b16 %v183, %v182
  %v192 = vpack.c.b16 %v185, %v184
  %v193 = vpack.c.b16 %v187, %v186
  %v201 = vsel %vm104, %v144, 0
  %203 = vmatprep.subr.bf16.mxu0 0
  %204 = vmatpush1.bf16.msra.mxu0 0
  %205 = vmatprep.subr.bf16.mxu0 0
  %206 = vmatpush1.bf16.msra.mxu0 0
  %207 = vmatprep.subr.bf16.mxu0 0
  %208 = vmatpush1.bf16.msra.mxu0 %v193
  %209 = vmatprep.subr.bf16.mxu0 0
  %210 = vmatpush1.bf16.msra.mxu0 %v192
  %211 = vmatprep.subr.bf16.mxu0 0
  %212 = vmatpush1.bf16.msra.mxu0 %v191
  %213 = vmatprep.subr.bf16.mxu0 0
  %214 = vmatpush1.bf16.msra.mxu0 %v190
  %215 = vmatprep.subr.bf16.mxu0 0
  %216 = vmatpush1.bf16.msra.mxu0 %v189
  %217 = vmatprep.subr.bf16.mxu0 0
  %218 = vmatpush1.bf16.msra.mxu0 %v188
  %219 = vmatprep.subr.bf16.mxu0 0
  %220 = vmatpush2.bf16.msra.mxu0 0
  %221 = vmatprep.subr.bf16.mxu0 0
  %222 = vmatpush2.bf16.msra.mxu0 0
  %223 = vmatprep.subr.bf16.mxu0 0
  %224 = vmatpush2.bf16.msra.mxu0 0
  %225 = vmatprep.subr.bf16.mxu0 0
  %226 = vmatpush2.bf16.msra.mxu0 0
  %227 = vmatprep.subr.bf16.mxu0 0
  %228 = vmatpush2.bf16.msra.mxu0 0
  %229 = vmatprep.subr.bf16.mxu0 0
  %230 = vmatpush2.bf16.msra.mxu0 0
  %231 = vmatprep.subr.bf16.mxu0 0
  %232 = vmatpush2.bf16.msra.mxu0 0
  %233 = vmatprep.subr.bf16.mxu0 0
  %234 = vmatpush2.bf16.msra.mxu0 0
  %235 = vmatprep.mubr.bf16.mxu0 0
  %236 = vmatmul.mubr.bf16.gmra.mxu0 %v201
  %v237 = vpop.f32.mrf.mxu0
  %v238 = vadd.f32 %v162, %v237
  %v239 = vpop.f32.mrf.mxu0
  %v240 = vpop.f32.mrf.mxu0
  %v241 = vpop.f32.mrf.mxu0
  %242 = vdwg.mxu0
  %v243 = vld [vmem:[%s7] sm:$0x1]
  %v244 = vld [vmem:[%s8] sm:$0x1]
  %vm245 = vcmask 72704
  %v246 = vsel %vm245, %v238, 0.0
  %v247 = vrot.slane %v246, 4
  %v248 = vadd.f32 %v246, %v247
  %v249 = vrot.slane %v248, 2
  %v250 = vadd.f32 %v248, %v249
  %v251 = vrot.slane %v250, 1
  %v252 = vadd.f32 %v250, %v251
  %v253 = vmul.f32 %v252, %v112
  %v254 = vsub.f32 %v238, %v253
  %v255 = vmul.f32 %v254, %v254
  %v256 = vsel %vm245, %v255, 0.0
  %v257 = vrot.slane %v256, 4
  %v258 = vadd.f32 %v256, %v257
  %v259 = vrot.slane %v258, 2
  %v260 = vadd.f32 %v258, %v259
  %v261 = vrot.slane %v260, 1
  %v262 = vadd.f32 %v260, %v261
  %v263 = vmul.f32 %v262, %v112
  %v264 = vadd.f32 %v263, 1e-05
  %v265 = vrsqrt.pop %v264
  %v266 = vmul.f32 %v254, %v265
  %v268 = vlaneseq
  %v269 = vshrl.u32 %v268, 7
  %v270 = vsub.s32 0, %v269
  %v271 = vrot.slane %v243, %v270
  %v273 = vmul.f32 %v266, %v271
  %v275 = vlaneseq
  %v276 = vshrl.u32 %v275, 7
  %v277 = vsub.s32 0, %v276
  %v278 = vrot.slane %v244, %v277
  %v280 = vadd.f32 %v273, %v278
  %281 = vst.msk [vmem:[%s9] sm:$0xff] %vm245, %v280
  // Predicated region
  $region38: #{bascvi_forward.7} parent=0 // pred_check
    _
  $region39: #{bascvi_forward.7} parent=0 // pred_check_branch
    %283 = sbr.rel (0) target = $region41
  $region40: #{bascvi_forward.7} parent=0 // pred_region
    _
  $region41: #{bascvi_forward.7} parent=0 // pred_fallthru
    _
  // Predicated region
  $region42: #{bascvi_forward.7} parent=0 // pred_check
    _
  $region43: #{bascvi_forward.7} parent=0 // pred_check_branch
    %285 = sbr.rel (0) target = $region45
  $region44: #{bascvi_forward.7} parent=0 // pred_region
    _
  $region45: #{bascvi_forward.7} parent=0 // pred_fallthru
    _

// kernel: bascvi_forward.6
$region0: #{bascvi_forward.6}
  #allocation0 [shape = 'u32[]', space=smem, size = 0x4, offset = 0x4, fixed_abs, tag = 'smem constant byte address 0x4 - core index']
  #allocation1 [shape = 'u32[144,128]{1,0:T(1,128)}', space=vmem, size = 0x12000, scoped, tag = 'internal scratch']
  #allocation2 [shape = 'f32[8,64]{1,0:T(8,128)}', space=vmem, size = 0x1000, scoped, tag = 'scratch operand']
  %s0 = inlined_call_operand.vmem [shape: f32[8,128], index: 0, kind: input, shape index: {}]
  %s1 = inlined_call_operand.vmem [shape: f32[8,1], index: 1, kind: input, shape index: {}]
  %s2 = inlined_call_operand.vmem [shape: f32[8,9], index: 2, kind: input, shape index: {}]
  %s3 = inlined_call_operand.vmem [shape: bf16[128,64], index: 3, kind: input, shape index: {}]
  %s4 = inlined_call_operand.vmem [shape: bf16[9,64], index: 4, kind: input, shape index: {}]
  %s5 = inlined_call_operand.vmem [shape: f32[1,64], index: 5, kind: input, shape index: {}]
  %s6 = inlined_call_operand.vmem [shape: f32[1,64], index: 6, kind: input, shape index: {}]
  %s7 = inlined_call_operand.vmem [shape: f32[1,64], index: 7, kind: input, shape index: {}]
  %s8 = inlined_call_operand.vmem [shape: bf16[64,22], index: 8, kind: input, shape index: {}]
  %s9 = inlined_call_operand.vmem [shape: f32[1,22], index: 9, kind: input, shape index: {}]
  %s10 = inlined_call_operand.vmem [shape: f32[8,64], index: 10, kind: output, shape index: {0}]
  %s11 = inlined_call_operand.vmem [shape: f32[8,22], index: 11, kind: output, shape index: {1}]
  %12 = xla_tuple %s10, %s11
  %s13 = sld [smem:[#allocation0]]
  $region66: #{bascvi_forward.6} parent=0
    _
  %s15 = ssub.s32 1, %s13
  %s16 = scalar_select 0, %s15, %s13
  // Predicated region
  $region2: #{bascvi_forward.6} parent=0 // pred_check
    _
  $region3: #{bascvi_forward.6} parent=0 // pred_check_branch
    %18 = sbr.rel (0) target = $region5
  $region4: #{bascvi_forward.6} parent=0 // pred_region
    _
  $region5: #{bascvi_forward.6} parent=0 // pred_fallthru
    _
  // Predicated region
  $region6: #{bascvi_forward.6} parent=0 // pred_check
    _
  $region7: #{bascvi_forward.6} parent=0 // pred_check_branch
    %20 = sbr.rel (0) target = $region9
  $region8: #{bascvi_forward.6} parent=0 // pred_region
    _
  $region9: #{bascvi_forward.6} parent=0 // pred_fallthru
    _
  // Predicated region
  $region10: #{bascvi_forward.6} parent=0 // pred_check
    _
  $region11: #{bascvi_forward.6} parent=0 // pred_check_branch
    %22 = sbr.rel (0) target = $region13
  $region12: #{bascvi_forward.6} parent=0 // pred_region
    _
  $region13: #{bascvi_forward.6} parent=0 // pred_fallthru
    _
  // Predicated region
  $region14: #{bascvi_forward.6} parent=0 // pred_check
    _
  $region15: #{bascvi_forward.6} parent=0 // pred_check_branch
    %24 = sbr.rel (0) target = $region17
  $region16: #{bascvi_forward.6} parent=0 // pred_region
    _
  $region17: #{bascvi_forward.6} parent=0 // pred_fallthru
    _
  // Predicated region
  $region18: #{bascvi_forward.6} parent=0 // pred_check
    _
  $region19: #{bascvi_forward.6} parent=0 // pred_check_branch
    %26 = sbr.rel (0) target = $region21
  $region20: #{bascvi_forward.6} parent=0 // pred_region
    _
  $region21: #{bascvi_forward.6} parent=0 // pred_fallthru
    _
  // Predicated region
  $region22: #{bascvi_forward.6} parent=0 // pred_check
    _
  $region23: #{bascvi_forward.6} parent=0 // pred_check_branch
    %28 = sbr.rel (0) target = $region25
  $region24: #{bascvi_forward.6} parent=0 // pred_region
    _
  $region25: #{bascvi_forward.6} parent=0 // pred_fallthru
    _
  // Predicated region
  $region26: #{bascvi_forward.6} parent=0 // pred_check
    _
  $region27: #{bascvi_forward.6} parent=0 // pred_check_branch
    %30 = sbr.rel (0) target = $region29
  $region28: #{bascvi_forward.6} parent=0 // pred_region
    _
  $region29: #{bascvi_forward.6} parent=0 // pred_fallthru
    _
  // Predicated region
  $region30: #{bascvi_forward.6} parent=0 // pred_check
    _
  $region31: #{bascvi_forward.6} parent=0 // pred_check_branch
    %32 = sbr.rel (0) target = $region33
  $region32: #{bascvi_forward.6} parent=0 // pred_region
    _
  $region33: #{bascvi_forward.6} parent=0 // pred_fallthru
    _
  // Predicated region
  $region34: #{bascvi_forward.6} parent=0 // pred_check
    _
  $region35: #{bascvi_forward.6} parent=0 // pred_check_branch
    %34 = sbr.rel (0) target = $region37
  $region36: #{bascvi_forward.6} parent=0 // pred_region
    _
  $region37: #{bascvi_forward.6} parent=0 // pred_fallthru
    _
  // Predicated region
  $region38: #{bascvi_forward.6} parent=0 // pred_check
    _
  $region39: #{bascvi_forward.6} parent=0 // pred_check_branch
    %36 = sbr.rel (0) target = $region41
  $region40: #{bascvi_forward.6} parent=0 // pred_region
    _
  $region41: #{bascvi_forward.6} parent=0 // pred_fallthru
    _
  %p38 = scmp.eq.s32.totalorder 0, 0
  // Predicated region
  $region42: #{bascvi_forward.6} parent=0 // pred_check
    %p39 = pneg %p38
  $region43: #{bascvi_forward.6} parent=0 // pred_check_branch
    %41 = sbr.rel (%p39) target = $region45
  $region44: #{bascvi_forward.6} parent=0 // pred_region
    %v42 = vld [vmem:[%s2] sm:$0xff]
    %v43 = vpack.c.bf16 %v42, %v42
    %v44 = vld [vmem:[%s4] sm:$0xf]
    %v45 = vld [vmem:[%s4 + $0x4] sm:$0x1]
    %v46 = vld [vmem:[%s5] sm:$0x1]
    %v48 = vlaneseq
    %v49 = vshrl.u32 %v48, 7
    %v50 = vsub.s32 0, %v49
    %v51 = vrot.slane %v46, %v50
    %v55 = vunpack.c.l.b16 %v44
    %v56 = vunpack.c.l.b16 %v45
    %v57 = vpack.c.b16 %v56, %v55
    %vm58 = vcmask 72704
    %v60 = vsel %vm58, %v43, 0
    %vm62 = vcmask 1043456
    %vm63 = vcmask 1044480
    %v64 = vsel %vm62, 4294967295, 65535
    %v65 = vsel %vm63, %v64, 0
    %v67 = vand.u32 %v57, %v65
    %69 = vmatprep.subr.bf16.mxu0 0
    %70 = vmatpush1.bf16.msra.mxu0 0
    %71 = vmatprep.subr.bf16.mxu0 0
    %72 = vmatpush1.bf16.msra.mxu0 0
    %73 = vmatprep.subr.bf16.mxu0 0
    %74 = vmatpush1.bf16.msra.mxu0 0
    %75 = vmatprep.subr.bf16.mxu0 0
    %76 = vmatpush1.bf16.msra.mxu0 0
    %77 = vmatprep.subr.bf16.mxu0 0
    %78 = vmatpush1.bf16.msra.mxu0 0
    %79 = vmatprep.subr.bf16.mxu0 0
    %80 = vmatpush1.bf16.msra.mxu0 0
    %81 = vmatprep.subr.bf16.mxu0 0
    %82 = vmatpush1.bf16.msra.mxu0 0
    %83 = vmatprep.subr.bf16.mxu0 0
    %84 = vmatpush1.bf16.msra.mxu0 %v67
    %85 = vmatprep.subr.bf16.mxu0 0
    %86 = vmatpush2.bf16.msra.mxu0 0
    %87 = vmatprep.subr.bf16.mxu0 0
    %88 = vmatpush2.bf16.msra.mxu0 0
    %89 = vmatprep.subr.bf16.mxu0 0
    %90 = vmatpush2.bf16.msra.mxu0 0
    %91 = vmatprep.subr.bf16.mxu0 0
    %92 = vmatpush2.bf16.msra.mxu0 0
    %93 = vmatprep.subr.bf16.mxu0 0
    %94 = vmatpush2.bf16.msra.mxu0 0
    %95 = vmatprep.subr.bf16.mxu0 0
    %96 = vmatpush2.bf16.msra.mxu0 0
    %97 = vmatprep.subr.bf16.mxu0 0
    %98 = vmatpush2.bf16.msra.mxu0 0
    %99 = vmatprep.subr.bf16.mxu0 0
    %100 = vmatpush2.bf16.msra.mxu0 0
    %101 = vmatprep.mubr.bf16.mxu0 0
    %102 = vmatmul.mubr.bf16.gmra.mxu0 %v60
    %v103 = vpop.f32.mrf.mxu0
    %v104 = vadd.f32 %v51, %v103
    %v105 = vpop.f32.mrf.mxu0
    %v106 = vpop.f32.mrf.mxu0
    %v107 = vpop.f32.mrf.mxu0
    %108 = vdwg.mxu0
    %vm109 = vcmask 523264
    %110 = vst.msk [vmem:[#allocation2] sm:$0xff] %vm109, %v104
  $region45: #{bascvi_forward.6} parent=0 // pred_fallthru
    _
  %v111 = vld [vmem:[%s0] sm:$0xff]
  %v112 = vld [vmem:[%s1] sm:$0xff]
  %114 = vset.pattern.permute.xlu0 0
  %115 = vperm.xlu0 %114, %v112
  %v116 = vpop.permute.xlu0 %115
  %v118 = vmul.f32 %v111, %v116
  %v119 = vadd.f32 %v118, 1.0
  %v120 = vlog2.pop %v119
  %v121 = vmul.f32 %v120, 0.6931472
  %v122 = vld [vmem:[#allocation2] sm:$0xff]
  %v123 = vpack.c.bf16 %v121, %v121
  %v124 = vld [vmem:[%s3] sm:$0xf]
  %v125 = vld [vmem:[%s3 + $0x4] sm:$0xf]
  %v126 = vld [vmem:[%s3 + $0x8] sm:$0xf]
  %v127 = vld [vmem:[%s3 + $0xc] sm:$0xf]
  %v128 = vld [vmem:[%s3 + $0x10] sm:$0xf]
  %v129 = vld [vmem:[%s3 + $0x14] sm:$0xf]
  %v130 = vld [vmem:[%s3 + $0x18] sm:$0xf]
  %v131 = vld [vmem:[%s3 + $0x1c] sm:$0xf]
  %v132 = vld [vmem:[%s3 + $0x20] sm:$0xf]
  %v133 = vld [vmem:[%s3 + $0x24] sm:$0xf]
  %v134 = vld [vmem:[%s3 + $0x28] sm:$0xf]
  %v135 = vld [vmem:[%s3 + $0x2c] sm:$0xf]
  %v136 = vld [vmem:[%s3 + $0x30] sm:$0xf]
  %v137 = vld [vmem:[%s3 + $0x34] sm:$0xf]
  %v138 = vld [vmem:[%s3 + $0x38] sm:$0xf]
  %v139 = vld [vmem:[%s3 + $0x3c] sm:$0xf]
  %v156 = vunpack.c.l.b16 %v124
  %v157 = vunpack.c.l.b16 %v125
  %v158 = vunpack.c.l.b16 %v126
  %v159 = vunpack.c.l.b16 %v127
  %v160 = vunpack.c.l.b16 %v128
  %v161 = vunpack.c.l.b16 %v129
  %v162 = vunpack.c.l.b16 %v130
  %v163 = vunpack.c.l.b16 %v131
  %v164 = vunpack.c.l.b16 %v132
  %v165 = vunpack.c.l.b16 %v133
  %v166 = vunpack.c.l.b16 %v134
  %v167 = vunpack.c.l.b16 %v135
  %v168 = vunpack.c.l.b16 %v136
  %v169 = vunpack.c.l.b16 %v137
  %v170 = vunpack.c.l.b16 %v138
  %v171 = vunpack.c.l.b16 %v139
  %v172 = vpack.c.b16 %v157, %v156
  %v173 = vpack.c.b16 %v159, %v158
  %v174 = vpack.c.b16 %v161, %v160
  %v175 = vpack.c.b16 %v163, %v162
  %v176 = vpack.c.b16 %v165, %v164
  %v177 = vpack.c.b16 %v167, %v166
  %v178 = vpack.c.b16 %v169, %v168
  %v179 = vpack.c.b16 %v171, %v170
  %188 = vmatprep.subr.bf16.mxu0 0
  %189 = vmatpush1.bf16.msra.mxu0 %v179
  %190 = vmatprep.subr.bf16.mxu0 0
  %191 = vmatpush1.bf16.msra.mxu0 %v178
  %192 = vmatprep.subr.bf16.mxu0 0
  %193 = vmatpush1.bf16.msra.mxu0 %v177
  %194 = vmatprep.subr.bf16.mxu0 0
  %195 = vmatpush1.bf16.msra.mxu0 %v176
  %196 = vmatprep.subr.bf16.mxu0 0
  %197 = vmatpush1.bf16.msra.mxu0 %v175
  %198 = vmatprep.subr.bf16.mxu0 0
  %199 = vmatpush1.bf16.msra.mxu0 %v174
  %200 = vmatprep.subr.bf16.mxu0 0
  %201 = vmatpush1.bf16.msra.mxu0 %v173
  %202 = vmatprep.subr.bf16.mxu0 0
  %203 = vmatpush1.bf16.msra.mxu0 %v172
  %204 = vmatprep.subr.bf16.mxu0 0
  %205 = vmatpush2.bf16.msra.mxu0 0
  %206 = vmatprep.subr.bf16.mxu0 0
  %207 = vmatpush2.bf16.msra.mxu0 0
  %208 = vmatprep.subr.bf16.mxu0 0
  %209 = vmatpush2.bf16.msra.mxu0 0
  %210 = vmatprep.subr.bf16.mxu0 0
  %211 = vmatpush2.bf16.msra.mxu0 0
  %212 = vmatprep.subr.bf16.mxu0 0
  %213 = vmatpush2.bf16.msra.mxu0 0
  %214 = vmatprep.subr.bf16.mxu0 0
  %215 = vmatpush2.bf16.msra.mxu0 0
  %216 = vmatprep.subr.bf16.mxu0 0
  %217 = vmatpush2.bf16.msra.mxu0 0
  %218 = vmatprep.subr.bf16.mxu0 0
  %219 = vmatpush2.bf16.msra.mxu0 0
  %220 = vmatprep.mubr.bf16.mxu0 0
  %221 = vmatmul.mubr.bf16.gmra.mxu0 %v123
  %v222 = vpop.f32.mrf.mxu0
  %v223 = vadd.f32 0.0, %v222
  %v224 = vpop.f32.mrf.mxu0
  %v225 = vpop.f32.mrf.mxu0
  %v226 = vpop.f32.mrf.mxu0
  %227 = vdwg.mxu0
  %v228 = vadd.f32 %v122, %v223
  %vm229 = vcmask 523264
  %230 = vst.msk [vmem:[#allocation2] sm:$0xff] %vm229, %v228
  // Predicated region
  $region46: #{bascvi_forward.6} parent=0 // pred_check
    %p231 = pneg %p38
  $region47: #{bascvi_forward.6} parent=0 // pred_check_branch
    %233 = sbr.rel (%p231) target = $region49
  $region48: #{bascvi_forward.6} parent=0 // pred_region
    %v234 = vld [vmem:[#allocation2] sm:$0xff]
    %v235 = vld [vmem:[%s6] sm:$0x1]
    %v236 = vld [vmem:[%s7] sm:$0x1]
    %v237 = vsel %vm229, %v234, 0.0
    %v238 = vrot.slane %v237, 4
    %v239 = vadd.f32 %v237, %v238
    %v240 = vrot.slane %v239, 2
    %v241 = vadd.f32 %v239, %v240
    %v242 = vrot.slane %v241, 1
    %v243 = vadd.f32 %v241, %v242
    %v244 = vrcp.pop 8.0
    %v245 = vmul.f32 %v243, %v244
    %v246 = vsub.f32 %v234, %v245
    %v247 = vmul.f32 %v246, %v246
    %v248 = vsel %vm229, %v247, 0.0
    %v249 = vrot.slane %v248, 4
    %v250 = vadd.f32 %v248, %v249
    %v251 = vrot.slane %v250, 2
    %v252 = vadd.f32 %v250, %v251
    %v253 = vrot.slane %v252, 1
    %v254 = vadd.f32 %v252, %v253
    %v255 = vmul.f32 %v254, %v244
    %v256 = vadd.f32 %v255, 1e-05
    %v257 = vrsqrt.pop %v256
    %v258 = vmul.f32 %v246, %v257
    %v260 = vlaneseq
    %v261 = vshrl.u32 %v260, 7
    %v262 = vsub.s32 0, %v261
    %v263 = vrot.slane %v235, %v262
    %v265 = vmul.f32 %v258, %v263
    %v267 = vlaneseq
    %v268 = vshrl.u32 %v267, 7
    %v269 = vsub.s32 0, %v268
    %v270 = vrot.slane %v236, %v269
    %v272 = vadd.f32 %v265, %v270
    %vm273 = vcmp.gt.f32.partialorder %v272, 0.0
    %v274 = vmul.f32 %v272, 0.01
    %v275 = vsel %vm273, %v272, %v274
    %276 = vst.msk [vmem:[%s10] sm:$0xff] %vm229, %v275
    %v277 = vpack.c.bf16 %v275, %v275
    %v278 = vld [vmem:[%s8] sm:$0xf]
    %v279 = vld [vmem:[%s8 + $0x4] sm:$0xf]
    %v280 = vld [vmem:[%s8 + $0x8] sm:$0xf]
    %v281 = vld [vmem:[%s8 + $0xc] sm:$0xf]
    %v282 = vld [vmem:[%s8 + $0x10] sm:$0xf]
    %v283 = vld [vmem:[%s8 + $0x14] sm:$0xf]
    %v284 = vld [vmem:[%s8 + $0x18] sm:$0xf]
    %v285 = vld [vmem:[%s8 + $0x1c] sm:$0xf]
    %v286 = vld [vmem:[%s9] sm:$0x1]
    %v288 = vlaneseq
    %v289 = vshrl.u32 %v288, 7
    %v290 = vsub.s32 0, %v289
    %v291 = vrot.slane %v286, %v290
    %v301 = vunpack.c.l.b16 %v278
    %v302 = vunpack.c.l.b16 %v279
    %v303 = vunpack.c.l.b16 %v280
    %v304 = vunpack.c.l.b16 %v281
    %v305 = vunpack.c.l.b16 %v282
    %v306 = vunpack.c.l.b16 %v283
    %v307 = vunpack.c.l.b16 %v284
    %v308 = vunpack.c.l.b16 %v285
    %v309 = vpack.c.b16 %v302, %v301
    %v310 = vpack.c.b16 %v304, %v303
    %v311 = vpack.c.b16 %v306, %v305
    %v312 = vpack.c.b16 %v308, %v307
    %v318 = vsel %vm229, %v277, 0
    %320 = vmatprep.subr.bf16.mxu0 0
    %321 = vmatpush1.bf16.msra.mxu0 0
    %322 = vmatprep.subr.bf16.mxu0 0
    %323 = vmatpush1.bf16.msra.mxu0 0
    %324 = vmatprep.subr.bf16.mxu0 0
    %325 = vmatpush1.bf16.msra.mxu0 0
    %326 = vmatprep.subr.bf16.mxu0 0
    %327 = vmatpush1.bf16.msra.mxu0 0
    %328 = vmatprep.subr.bf16.mxu0 0
    %329 = vmatpush1.bf16.msra.mxu0 %v312
    %330 = vmatprep.subr.bf16.mxu0 0
    %331 = vmatpush1.bf16.msra.mxu0 %v311
    %332 = vmatprep.subr.bf16.mxu0 0
    %333 = vmatpush1.bf16.msra.mxu0 %v310
    %334 = vmatprep.subr.bf16.mxu0 0
    %335 = vmatpush1.bf16.msra.mxu0 %v309
    %336 = vmatprep.subr.bf16.mxu0 0
    %337 = vmatpush2.bf16.msra.mxu0 0
    %338 = vmatprep.subr.bf16.mxu0 0
    %339 = vmatpush2.bf16.msra.mxu0 0
    %340 = vmatprep.subr.bf16.mxu0 0
    %341 = vmatpush2.bf16.msra.mxu0 0
    %342 = vmatprep.subr.bf16.mxu0 0
    %343 = vmatpush2.bf16.msra.mxu0 0
    %344 = vmatprep.subr.bf16.mxu0 0
    %345 = vmatpush2.bf16.msra.mxu0 0
    %346 = vmatprep.subr.bf16.mxu0 0
    %347 = vmatpush2.bf16.msra.mxu0 0
    %348 = vmatprep.subr.bf16.mxu0 0
    %349 = vmatpush2.bf16.msra.mxu0 0
    %350 = vmatprep.subr.bf16.mxu0 0
    %351 = vmatpush2.bf16.msra.mxu0 0
    %352 = vmatprep.mubr.bf16.mxu0 0
    %353 = vmatmul.mubr.bf16.gmra.mxu0 %v318
    %v354 = vpop.f32.mrf.mxu0
    %v355 = vadd.f32 %v291, %v354
    %v356 = vpop.f32.mrf.mxu0
    %v357 = vpop.f32.mrf.mxu0
    %v358 = vpop.f32.mrf.mxu0
    %359 = vdwg.mxu0
    %vm360 = vcmask 179200
    %361 = vst.msk [vmem:[%s11] sm:$0xff] %vm360, %v355
  $region49: #{bascvi_forward.6} parent=0 // pred_fallthru
    _
  // Predicated region
  $region50: #{bascvi_forward.6} parent=0 // pred_check
    _
  $region51: #{bascvi_forward.6} parent=0 // pred_check_branch
    %363 = sbr.rel (0) target = $region53
  $region52: #{bascvi_forward.6} parent=0 // pred_region
    _
  $region53: #{bascvi_forward.6} parent=0 // pred_fallthru
    _
  // Predicated region
  $region54: #{bascvi_forward.6} parent=0 // pred_check
    _
  $region55: #{bascvi_forward.6} parent=0 // pred_check_branch
    %365 = sbr.rel (0) target = $region57
  $region56: #{bascvi_forward.6} parent=0 // pred_region
    _
  $region57: #{bascvi_forward.6} parent=0 // pred_fallthru
    _
  // Predicated region
  $region58: #{bascvi_forward.6} parent=0 // pred_check
    _
  $region59: #{bascvi_forward.6} parent=0 // pred_check_branch
    %367 = sbr.rel (0) target = $region61
  $region60: #{bascvi_forward.6} parent=0 // pred_region
    _
  $region61: #{bascvi_forward.6} parent=0 // pred_fallthru
    _
  // Predicated region
  $region62: #{bascvi_forward.6} parent=0 // pred_check
    _
  $region63: #{bascvi_forward.6} parent=0 // pred_check_branch
    %369 = sbr.rel (0) target = $region65
  $region64: #{bascvi_forward.6} parent=0 // pred_region
    _
  $region65: #{bascvi_forward.6} parent=0 // pred_fallthru
    _

// kernel: bascvi_forward.9
$region0: #{bascvi_forward.9}
  #allocation0 [shape = 'u32[]', space=smem, size = 0x4, offset = 0x4, fixed_abs, tag = 'smem constant byte address 0x4 - core index']
  #allocation1 [shape = 'u32[144,128]{1,0:T(1,128)}', space=vmem, size = 0x12000, scoped, tag = 'internal scratch']
  #allocation2 [shape = 'f32[8,1]{1,0:T(8,128)}', space=vmem, size = 0x1000, scoped, tag = 'scratch operand']
  #allocation3 [shape = 'f32[8,1]{1,0:T(8,128)}', space=vmem, size = 0x1000, scoped, tag = 'scratch operand']
  %s0 = inlined_call_operand.vmem [shape: f32[8,32], index: 0, kind: input, shape index: {}]
  %s1 = inlined_call_operand.vmem [shape: bf16[32,128], index: 1, kind: input, shape index: {}]
  %s2 = inlined_call_operand.vmem [shape: f32[1,128], index: 2, kind: input, shape index: {}]
  %s3 = inlined_call_operand.vmem [shape: bf16[8,128], index: 3, kind: output, shape index: {0}]
  %s4 = inlined_call_operand.vmem [shape: f32[8,1], index: 4, kind: output, shape index: {1}]
  %5 = xla_tuple %s3, %s4
  %s6 = sld [smem:[#allocation0]]
  $region38: #{bascvi_forward.9} parent=0
    _
  %s8 = ssub.s32 1, %s6
  %s9 = scalar_select 0, %s8, %s6
  // Predicated region
  $region2: #{bascvi_forward.9} parent=0 // pred_check
    _
  $region3: #{bascvi_forward.9} parent=0 // pred_check_branch
    %11 = sbr.rel (0) target = $region5
  $region4: #{bascvi_forward.9} parent=0 // pred_region
    _
  $region5: #{bascvi_forward.9} parent=0 // pred_fallthru
    _
  // Predicated region
  $region6: #{bascvi_forward.9} parent=0 // pred_check
    _
  $region7: #{bascvi_forward.9} parent=0 // pred_check_branch
    %13 = sbr.rel (0) target = $region9
  $region8: #{bascvi_forward.9} parent=0 // pred_region
    _
  $region9: #{bascvi_forward.9} parent=0 // pred_fallthru
    _
  // Predicated region
  $region10: #{bascvi_forward.9} parent=0 // pred_check
    _
  $region11: #{bascvi_forward.9} parent=0 // pred_check_branch
    %15 = sbr.rel (0) target = $region13
  $region12: #{bascvi_forward.9} parent=0 // pred_region
    _
  $region13: #{bascvi_forward.9} parent=0 // pred_fallthru
    _
  %v17 = vld [vmem:[%s0] sm:$0xff]
  %v18 = vpack.c.bf16 %v17, %v17
  %v19 = vld [vmem:[%s1] sm:$0xf]
  %v20 = vld [vmem:[%s1 + $0x4] sm:$0xf]
  %v21 = vld [vmem:[%s1 + $0x8] sm:$0xf]
  %v22 = vld [vmem:[%s1 + $0xc] sm:$0xf]
  %v23 = vld [vmem:[%s2] sm:$0x1]
  %v25 = vlaneseq
  %v26 = vshrl.u32 %v25, 7
  %v27 = vsub.s32 0, %v26
  %v28 = vrot.slane %v23, %v27
  %v34 = vunpack.c.l.b16 %v19
  %v35 = vunpack.c.l.b16 %v20
  %v36 = vunpack.c.l.b16 %v21
  %v37 = vunpack.c.l.b16 %v22
  %v38 = vpack.c.b16 %v35, %v34
  %v39 = vpack.c.b16 %v37, %v36
  %vm42 = vcmask 261120
  %v44 = vsel %vm42, %v18, 0
  %46 = vmatprep.subr.bf16.mxu0 0
  %47 = vmatpush1.bf16.msra.mxu0 0
  %48 = vmatprep.subr.bf16.mxu0 0
  %49 = vmatpush1.bf16.msra.mxu0 0
  %50 = vmatprep.subr.bf16.mxu0 0
  %51 = vmatpush1.bf16.msra.mxu0 0
  %52 = vmatprep.subr.bf16.mxu0 0
  %53 = vmatpush1.bf16.msra.mxu0 0
  %54 = vmatprep.subr.bf16.mxu0 0
  %55 = vmatpush1.bf16.msra.mxu0 0
  %56 = vmatprep.subr.bf16.mxu0 0
  %57 = vmatpush1.bf16.msra.mxu0 0
  %58 = vmatprep.subr.bf16.mxu0 0
  %59 = vmatpush1.bf16.msra.mxu0 %v39
  %60 = vmatprep.subr.bf16.mxu0 0
  %61 = vmatpush1.bf16.msra.mxu0 %v38
  %62 = vmatprep.subr.bf16.mxu0 0
  %63 = vmatpush2.bf16.msra.mxu0 0
  %64 = vmatprep.subr.bf16.mxu0 0
  %65 = vmatpush2.bf16.msra.mxu0 0
  %66 = vmatprep.subr.bf16.mxu0 0
  %67 = vmatpush2.bf16.msra.mxu0 0
  %68 = vmatprep.subr.bf16.mxu0 0
  %69 = vmatpush2.bf16.msra.mxu0 0
  %70 = vmatprep.subr.bf16.mxu0 0
  %71 = vmatpush2.bf16.msra.mxu0 0
  %72 = vmatprep.subr.bf16.mxu0 0
  %73 = vmatpush2.bf16.msra.mxu0 0
  %74 = vmatprep.subr.bf16.mxu0 0
  %75 = vmatpush2.bf16.msra.mxu0 0
  %76 = vmatprep.subr.bf16.mxu0 0
  %77 = vmatpush2.bf16.msra.mxu0 0
  %78 = vmatprep.mubr.bf16.mxu0 0
  %79 = vmatmul.mubr.bf16.gmra.mxu0 %v44
  %v80 = vpop.f32.mrf.mxu0
  %v81 = vadd.f32 %v28, %v80
  %v82 = vpop.f32.mrf.mxu0
  %v83 = vpop.f32.mrf.mxu0
  %v84 = vpop.f32.mrf.mxu0
  %85 = vdwg.mxu0
  %v86 = vpack.c.bf16 %v81, %v81
  %87 = vst [vmem:[%s3] sm:$0xf] %v86
  %p88 = scmp.eq.s32.totalorder 0, 0
  // Predicated region
  $region14: #{bascvi_forward.9} parent=0 // pred_check
    %p89 = pneg %p88
  $region15: #{bascvi_forward.9} parent=0 // pred_check_branch
    %91 = sbr.rel (%p89) target = $region17
  $region16: #{bascvi_forward.9} parent=0 // pred_region
    %vm92 = vcmask 7168
    %93 = vst.msk [vmem:[#allocation2] sm:$0xff] %vm92, -1e+30
    %94 = vst.msk [vmem:[#allocation3] sm:$0xff] %vm92, 0.0
  $region17: #{bascvi_forward.9} parent=0 // pred_fallthru
    _
  %v95 = vld [vmem:[#allocation2] sm:$0xff]
  %96 = vmax.xlane.f32.xlu0 %v81
  %v97 = vpop.xlane.xlu0 %96
  %v98 = vmax.f32 %v95, %v97
  %v99 = vsub.f32 %v95, %v98
  %v100 = vmul.f32 %v99, 1.442695
  %v101 = vpow.pop %v100
  %v102 = vld [vmem:[#allocation3] sm:$0xff]
  %v103 = vmul.f32 %v101, %v102
  %105 = vset.pattern.permute.xlu0 0
  %106 = vperm.xlu0 %105, %v98
  %v107 = vpop.permute.xlu0 %106
  %v109 = vsub.f32 %v81, %v107
  %v110 = vmul.f32 %v109, 1.442695
  %v111 = vpow.pop %v110
  %112 = vadd.xlane.f32.xlu0 %v111
  %v113 = vpop.xlane.xlu0 %112
  %v114 = vadd.f32 %v103, %v113
  %vm115 = vcmask 7168
  %116 = vst.msk [vmem:[#allocation3] sm:$0xff] %vm115, %v114
  %117 = vst.msk [vmem:[#allocation2] sm:$0xff] %vm115, %v98
  // Predicated region
  $region18: #{bascvi_forward.9} parent=0 // pred_check
    %p118 = pneg %p88
  $region19: #{bascvi_forward.9} parent=0 // pred_check_branch
    %120 = sbr.rel (%p118) target = $region21
  $region20: #{bascvi_forward.9} parent=0 // pred_region
    %v121 = vld [vmem:[#allocation2] sm:$0xff]
    %v122 = vld [vmem:[#allocation3] sm:$0xff]
    %v123 = vlog2.pop %v122
    %v124 = vmul.f32 %v123, 0.6931472
    %v125 = vadd.f32 %v121, %v124
    %126 = vst.msk [vmem:[%s4] sm:$0xff] %vm115, %v125
  $region21: #{bascvi_forward.9} parent=0 // pred_fallthru
    _
  // Predicated region
  $region22: #{bascvi_forward.9} parent=0 // pred_check
    _
  $region23: #{bascvi_forward.9} parent=0 // pred_check_branch
    %128 = sbr.rel (0) target = $region25
  $region24: #{bascvi_forward.9} parent=0 // pred_region
    _
  $region25: #{bascvi_forward.9} parent=0 // pred_fallthru
    _
  // Predicated region
  $region26: #{bascvi_forward.9} parent=0 // pred_check
    _
  $region27: #{bascvi_forward.9} parent=0 // pred_check_branch
    %130 = sbr.rel (0) target = $region29
  $region28: #{bascvi_forward.9} parent=0 // pred_region
    _
  $region29: #{bascvi_forward.9} parent=0 // pred_fallthru
    _
  // Predicated region
  $region30: #{bascvi_forward.9} parent=0 // pred_check
    _
  $region31: #{bascvi_forward.9} parent=0 // pred_check_branch
    %132 = sbr.rel (0) target = $region33
  $region32: #{bascvi_forward.9} parent=0 // pred_region
    _
  $region33: #{bascvi_forward.9} parent=0 // pred_fallthru
    _
  // Predicated region
  $region34: #{bascvi_forward.9} parent=0 // pred_check
    _
  $region35: #{bascvi_forward.9} parent=0 // pred_check_branch
    %134 = sbr.rel (0) target = $region37
  $region36: #{bascvi_forward.9} parent=0 // pred_region
    _
  $region37: #{bascvi_forward.9} parent=0 // pred_fallthru
    _

// kernel: bascvi_forward.8
$region0: #{bascvi_forward.8}
  #allocation0 [shape = 'u32[]', space=smem, size = 0x4, offset = 0x4, fixed_abs, tag = 'smem constant byte address 0x4 - core index']
  #allocation1 [shape = 'u32[144,128]{1,0:T(1,128)}', space=vmem, size = 0x12000, scoped, tag = 'internal scratch']
  %s0 = inlined_call_operand.vmem [shape: f32[8,10], index: 0, kind: input, shape index: {}]
  %s1 = inlined_call_operand.vmem [shape: f32[8,9], index: 1, kind: input, shape index: {}]
  %s2 = inlined_call_operand.vmem [shape: bf16[10,32], index: 2, kind: input, shape index: {}]
  %s3 = inlined_call_operand.vmem [shape: bf16[9,32], index: 3, kind: input, shape index: {}]
  %s4 = inlined_call_operand.vmem [shape: f32[1,32], index: 4, kind: input, shape index: {}]
  %s5 = inlined_call_operand.vmem [shape: f32[1,32], index: 5, kind: input, shape index: {}]
  %s6 = inlined_call_operand.vmem [shape: f32[1,32], index: 6, kind: input, shape index: {}]
  %s7 = inlined_call_operand.vmem [shape: f32[8,32], index: 7, kind: output, shape index: {}]
  %s8 = sld [smem:[#allocation0]]
  $region38: #{bascvi_forward.8} parent=0
    _
  %s10 = ssub.s32 1, %s8
  %s11 = scalar_select 0, %s10, %s8
  // Predicated region
  $region2: #{bascvi_forward.8} parent=0 // pred_check
    _
  $region3: #{bascvi_forward.8} parent=0 // pred_check_branch
    %13 = sbr.rel (0) target = $region5
  $region4: #{bascvi_forward.8} parent=0 // pred_region
    _
  $region5: #{bascvi_forward.8} parent=0 // pred_fallthru
    _
  // Predicated region
  $region6: #{bascvi_forward.8} parent=0 // pred_check
    _
  $region7: #{bascvi_forward.8} parent=0 // pred_check_branch
    %15 = sbr.rel (0) target = $region9
  $region8: #{bascvi_forward.8} parent=0 // pred_region
    _
  $region9: #{bascvi_forward.8} parent=0 // pred_fallthru
    _
  // Predicated region
  $region10: #{bascvi_forward.8} parent=0 // pred_check
    _
  $region11: #{bascvi_forward.8} parent=0 // pred_check_branch
    %17 = sbr.rel (0) target = $region13
  $region12: #{bascvi_forward.8} parent=0 // pred_region
    _
  $region13: #{bascvi_forward.8} parent=0 // pred_fallthru
    _
  // Predicated region
  $region14: #{bascvi_forward.8} parent=0 // pred_check
    _
  $region15: #{bascvi_forward.8} parent=0 // pred_check_branch
    %19 = sbr.rel (0) target = $region17
  $region16: #{bascvi_forward.8} parent=0 // pred_region
    _
  $region17: #{bascvi_forward.8} parent=0 // pred_fallthru
    _
  // Predicated region
  $region18: #{bascvi_forward.8} parent=0 // pred_check
    _
  $region19: #{bascvi_forward.8} parent=0 // pred_check_branch
    %21 = sbr.rel (0) target = $region21
  $region20: #{bascvi_forward.8} parent=0 // pred_region
    _
  $region21: #{bascvi_forward.8} parent=0 // pred_fallthru
    _
  // Predicated region
  $region22: #{bascvi_forward.8} parent=0 // pred_check
    _
  $region23: #{bascvi_forward.8} parent=0 // pred_check_branch
    %23 = sbr.rel (0) target = $region25
  $region24: #{bascvi_forward.8} parent=0 // pred_region
    _
  $region25: #{bascvi_forward.8} parent=0 // pred_fallthru
    _
  // Predicated region
  $region26: #{bascvi_forward.8} parent=0 // pred_check
    _
  $region27: #{bascvi_forward.8} parent=0 // pred_check_branch
    %25 = sbr.rel (0) target = $region29
  $region28: #{bascvi_forward.8} parent=0 // pred_region
    _
  $region29: #{bascvi_forward.8} parent=0 // pred_fallthru
    _
  %v27 = vld [vmem:[%s0] sm:$0xff]
  %v28 = vpack.c.bf16 %v27, %v27
  %v29 = vld [vmem:[%s2] sm:$0xf]
  %v30 = vld [vmem:[%s2 + $0x4] sm:$0x1]
  %v31 = vld [vmem:[%s1] sm:$0xff]
  %v32 = vpack.c.bf16 %v31, %v31
  %v33 = vld [vmem:[%s3] sm:$0xf]
  %v34 = vld [vmem:[%s3 + $0x4] sm:$0x1]
  %v37 = vunpack.c.l.b16 %v33
  %v38 = vunpack.c.l.b16 %v34
  %v39 = vpack.c.b16 %v38, %v37
  %vm40 = vcmask 72704
  %v42 = vsel %vm40, %v32, 0
  %vm44 = vcmask 1043456
  %vm45 = vcmask 1044480
  %v46 = vsel %vm44, 4294967295, 65535
  %v47 = vsel %vm45, %v46, 0
  %v49 = vand.u32 %v39, %v47
  %51 = vmatprep.subr.bf16.mxu0 0
  %52 = vmatpush1.bf16.msra.mxu0 0
  %53 = vmatprep.subr.bf16.mxu0 0
  %54 = vmatpush1.bf16.msra.mxu0 0
  %55 = vmatprep.subr.bf16.mxu0 0
  %56 = vmatpush1.bf16.msra.mxu0 0
  %57 = vmatprep.subr.bf16.mxu0 0
  %58 = vmatpush1.bf16.msra.mxu0 0
  %59 = vmatprep.subr.bf16.mxu0 0
  %60 = vmatpush1.bf16.msra.mxu0 0
  %61 = vmatprep.subr.bf16.mxu0 0
  %62 = vmatpush1.bf16.msra.mxu0 0
  %63 = vmatprep.subr.bf16.mxu0 0
  %64 = vmatpush1.bf16.msra.mxu0 0
  %65 = vmatprep.subr.bf16.mxu0 0
  %66 = vmatpush1.bf16.msra.mxu0 %v49
  %67 = vmatprep.subr.bf16.mxu0 0
  %68 = vmatpush2.bf16.msra.mxu0 0
  %69 = vmatprep.subr.bf16.mxu0 0
  %70 = vmatpush2.bf16.msra.mxu0 0
  %71 = vmatprep.subr.bf16.mxu0 0
  %72 = vmatpush2.bf16.msra.mxu0 0
  %73 = vmatprep.subr.bf16.mxu0 0
  %74 = vmatpush2.bf16.msra.mxu0 0
  %75 = vmatprep.subr.bf16.mxu0 0
  %76 = vmatpush2.bf16.msra.mxu0 0
  %77 = vmatprep.subr.bf16.mxu0 0
  %78 = vmatpush2.bf16.msra.mxu0 0
  %79 = vmatprep.subr.bf16.mxu0 0
  %80 = vmatpush2.bf16.msra.mxu0 0
  %81 = vmatprep.subr.bf16.mxu0 0
  %82 = vmatpush2.bf16.msra.mxu0 0
  %83 = vmatprep.mubr.bf16.mxu0 0
  %84 = vmatmul.mubr.bf16.gmra.mxu0 %v42
  %v85 = vpop.f32.mrf.mxu0
  %v86 = vadd.f32 0.0, %v85
  %v87 = vpop.f32.mrf.mxu0
  %v88 = vpop.f32.mrf.mxu0
  %v89 = vpop.f32.mrf.mxu0
  %90 = vdwg.mxu0
  %v93 = vunpack.c.l.b16 %v29
  %v94 = vunpack.c.l.b16 %v30
  %v95 = vpack.c.b16 %v94, %v93
  %vm96 = vcmask 80896
  %v98 = vsel %vm96, %v28, 0
  %v101 = vsel %vm45, %v95, 0
  %103 = vmatprep.subr.bf16.mxu0 0
  %104 = vmatpush1.bf16.msra.mxu0 0
  %105 = vmatprep.subr.bf16.mxu0 0
  %106 = vmatpush1.bf16.msra.mxu0 0
  %107 = vmatprep.subr.bf16.mxu0 0
  %108 = vmatpush1.bf16.msra.mxu0 0
  %109 = vmatprep.subr.bf16.mxu0 0
  %110 = vmatpush1.bf16.msra.mxu0 0
  %111 = vmatprep.subr.bf16.mxu0 0
  %112 = vmatpush1.bf16.msra.mxu0 0
  %113 = vmatprep.subr.bf16.mxu0 0
  %114 = vmatpush1.bf16.msra.mxu0 0
  %115 = vmatprep.subr.bf16.mxu0 0
  %116 = vmatpush1.bf16.msra.mxu0 0
  %117 = vmatprep.subr.bf16.mxu0 0
  %118 = vmatpush1.bf16.msra.mxu0 %v101
  %119 = vmatprep.subr.bf16.mxu0 0
  %120 = vmatpush2.bf16.msra.mxu0 0
  %121 = vmatprep.subr.bf16.mxu0 0
  %122 = vmatpush2.bf16.msra.mxu0 0
  %123 = vmatprep.subr.bf16.mxu0 0
  %124 = vmatpush2.bf16.msra.mxu0 0
  %125 = vmatprep.subr.bf16.mxu0 0
  %126 = vmatpush2.bf16.msra.mxu0 0
  %127 = vmatprep.subr.bf16.mxu0 0
  %128 = vmatpush2.bf16.msra.mxu0 0
  %129 = vmatprep.subr.bf16.mxu0 0
  %130 = vmatpush2.bf16.msra.mxu0 0
  %131 = vmatprep.subr.bf16.mxu0 0
  %132 = vmatpush2.bf16.msra.mxu0 0
  %133 = vmatprep.subr.bf16.mxu0 0
  %134 = vmatpush2.bf16.msra.mxu0 0
  %135 = vmatprep.mubr.bf16.mxu0 0
  %136 = vmatmul.mubr.bf16.gmra.mxu0 %v98
  %v137 = vpop.f32.mrf.mxu0
  %v138 = vadd.f32 %v86, %v137
  %v139 = vpop.f32.mrf.mxu0
  %v140 = vpop.f32.mrf.mxu0
  %v141 = vpop.f32.mrf.mxu0
  %142 = vdwg.mxu0
  %v143 = vld [vmem:[%s4] sm:$0x1]
  %v145 = vlaneseq
  %v146 = vshrl.u32 %v145, 7
  %v147 = vsub.s32 0, %v146
  %v148 = vrot.slane %v143, %v147
  %v150 = vadd.f32 %v138, %v148
  %v151 = vld [vmem:[%s5] sm:$0x1]
  %v152 = vld [vmem:[%s6] sm:$0x1]
  %vm153 = vcmask 261120
  %v154 = vsel %vm153, %v150, 0.0
  %v155 = vrot.slane %v154, 4
  %v156 = vadd.f32 %v154, %v155
  %v157 = vrot.slane %v156, 2
  %v158 = vadd.f32 %v156, %v157
  %v159 = vrot.slane %v158, 1
  %v160 = vadd.f32 %v158, %v159
  %v161 = vrcp.pop 8.0
  %v162 = vmul.f32 %v160, %v161
  %v163 = vsub.f32 %v150, %v162
  %v164 = vmul.f32 %v163, %v163
  %v165 = vsel %vm153, %v164, 0.0
  %v166 = vrot.slane %v165, 4
  %v167 = vadd.f32 %v165, %v166
  %v168 = vrot.slane %v167, 2
  %v169 = vadd.f32 %v167, %v168
  %v170 = vrot.slane %v169, 1
  %v171 = vadd.f32 %v169, %v170
  %v172 = vmul.f32 %v171, %v161
  %v173 = vadd.f32 %v172, 1e-05
  %v174 = vrsqrt.pop %v173
  %v175 = vmul.f32 %v163, %v174
  %v177 = vlaneseq
  %v178 = vshrl.u32 %v177, 7
  %v179 = vsub.s32 0, %v178
  %v180 = vrot.slane %v151, %v179
  %v182 = vmul.f32 %v175, %v180
  %v184 = vlaneseq
  %v185 = vshrl.u32 %v184, 7
  %v186 = vsub.s32 0, %v185
  %v187 = vrot.slane %v152, %v186
  %v189 = vadd.f32 %v182, %v187
  %vm190 = vcmp.gt.f32.partialorder %v189, 0.0
  %v191 = vmul.f32 %v189, 0.01
  %v192 = vsel %vm190, %v189, %v191
  %193 = vst.msk [vmem:[%s7] sm:$0xff] %vm153, %v192
  // Predicated region
  $region30: #{bascvi_forward.8} parent=0 // pred_check
    _
  $region31: #{bascvi_forward.8} parent=0 // pred_check_branch
    %195 = sbr.rel (0) target = $region33
  $region32: #{bascvi_forward.8} parent=0 // pred_region
    _
  $region33: #{bascvi_forward.8} parent=0 // pred_fallthru
    _
  // Predicated region
  $region34: #{bascvi_forward.8} parent=0 // pred_check
    _
  $region35: #{bascvi_forward.8} parent=0 // pred_check_branch
    %197 = sbr.rel (0) target = $region37
  $region36: #{bascvi_forward.8} parent=0 // pred_region
    _
  $region37: #{bascvi_forward.8} parent=0 // pred_fallthru
    _

// kernel: bascvi_forward.10
$region0: #{bascvi_forward.10}
  #allocation0 [shape = 'u32[]', space=smem, size = 0x4, offset = 0x4, fixed_abs, tag = 'smem constant byte address 0x4 - core index']
  #allocation1 [shape = 'u32[144,128]{1,0:T(1,128)}', space=vmem, size = 0x12000, scoped, tag = 'internal scratch']
  %s0 = inlined_call_operand.vmem [shape: f32[8,32], index: 0, kind: input, shape index: {}]
  %s1 = inlined_call_operand.vmem [shape: bf16[8,128], index: 1, kind: input, shape index: {}]
  %s2 = inlined_call_operand.vmem [shape: bf16[32,128], index: 2, kind: input, shape index: {}]
  %s3 = inlined_call_operand.vmem [shape: f32[1,128], index: 3, kind: input, shape index: {}]
  %s4 = inlined_call_operand.vmem [shape: f32[8,1], index: 4, kind: input, shape index: {}]
  %s5 = inlined_call_operand.vmem [shape: f32[8,1], index: 5, kind: input, shape index: {}]
  %s6 = inlined_call_operand.vmem [shape: f32[8,128], index: 6, kind: input, shape index: {}]
  %s7 = inlined_call_operand.vmem [shape: f32[1,128], index: 7, kind: input, shape index: {}]
  %s8 = inlined_call_operand.vmem [shape: f32[1,128], index: 8, kind: input, shape index: {}]
  %s9 = inlined_call_operand.vmem [shape: f32[1,128], index: 9, kind: input, shape index: {}]
  %s10 = inlined_call_operand.vmem [shape: bf16[8,128], index: 10, kind: input, shape index: {}]
  %s11 = inlined_call_operand.hbm [shape: bf16[8,128], index: 11, kind: output, shape index: {0}]
  %s12 = inlined_call_operand.vmem [shape: bf16[8,128], index: 12, kind: output, shape index: {1}]
  %s13 = inlined_call_operand.vmem [shape: bf16[8,128], index: 13, kind: output, shape index: {2}]
  %s14 = inlined_call_operand.vmem [shape: f32[8,1], index: 14, kind: output, shape index: {3}]
  %15 = xla_tuple %s11, %s12, %s13, %s14
  %s16 = sld [smem:[#allocation0]]
  $region82: #{bascvi_forward.10} parent=0
    _
  %s18 = ssub.s32 1, %s16
  %s19 = scalar_select 0, %s18, %s16
  $region1: #{bascvi_forward.10} parent=0
    #allocation2 [shape = 'u8[2048]{0}', space=vmem, size = 0x800, scoped, tag = 'output window, operand 0, single buffered']
    #allocation3 [shape = 's32[1]{0}', space=sflag, size = 0x4, scoped, tag = 'scoped memory for bascvi_forward.10']
    %20 = vsyncpa [#allocation3], 0
    // Predicated region
    $region2: #{bascvi_forward.10} parent=1 // pred_check
      _
    $region3: #{bascvi_forward.10} parent=1 // pred_check_branch
      %22 = sbr.rel (0) target = $region5
    $region4: #{bascvi_forward.10} parent=1 // pred_region
      _
    $region5: #{bascvi_forward.10} parent=1 // pred_fallthru
      _
    // Predicated region
    $region6: #{bascvi_forward.10} parent=1 // pred_check
      _
    $region7: #{bascvi_forward.10} parent=1 // pred_check_branch
      %24 = sbr.rel (0) target = $region9
    $region8: #{bascvi_forward.10} parent=1 // pred_region
      _
    $region9: #{bascvi_forward.10} parent=1 // pred_fallthru
      _
    // Predicated region
    $region10: #{bascvi_forward.10} parent=1 // pred_check
      _
    $region11: #{bascvi_forward.10} parent=1 // pred_check_branch
      %26 = sbr.rel (0) target = $region13
    $region12: #{bascvi_forward.10} parent=1 // pred_region
      _
    $region13: #{bascvi_forward.10} parent=1 // pred_fallthru
      _
    // Predicated region
    $region14: #{bascvi_forward.10} parent=1 // pred_check
      _
    $region15: #{bascvi_forward.10} parent=1 // pred_check_branch
      %28 = sbr.rel (0) target = $region17
    $region16: #{bascvi_forward.10} parent=1 // pred_region
      _
    $region17: #{bascvi_forward.10} parent=1 // pred_fallthru
      _
    // Predicated region
    $region18: #{bascvi_forward.10} parent=1 // pred_check
      _
    $region19: #{bascvi_forward.10} parent=1 // pred_check_branch
      %30 = sbr.rel (0) target = $region21
    $region20: #{bascvi_forward.10} parent=1 // pred_region
      _
    $region21: #{bascvi_forward.10} parent=1 // pred_fallthru
      _
    // Predicated region
    $region22: #{bascvi_forward.10} parent=1 // pred_check
      _
    $region23: #{bascvi_forward.10} parent=1 // pred_check_branch
      %32 = sbr.rel (0) target = $region25
    $region24: #{bascvi_forward.10} parent=1 // pred_region
      _
    $region25: #{bascvi_forward.10} parent=1 // pred_fallthru
      _
    // Predicated region
    $region26: #{bascvi_forward.10} parent=1 // pred_check
      _
    $region27: #{bascvi_forward.10} parent=1 // pred_check_branch
      %34 = sbr.rel (0) target = $region29
    $region28: #{bascvi_forward.10} parent=1 // pred_region
      _
    $region29: #{bascvi_forward.10} parent=1 // pred_fallthru
      _
    // Predicated region
    $region30: #{bascvi_forward.10} parent=1 // pred_check
      _
    $region31: #{bascvi_forward.10} parent=1 // pred_check_branch
      %36 = sbr.rel (0) target = $region33
    $region32: #{bascvi_forward.10} parent=1 // pred_region
      _
    $region33: #{bascvi_forward.10} parent=1 // pred_fallthru
      _
    // Predicated region
    $region34: #{bascvi_forward.10} parent=1 // pred_check
      _
    $region35: #{bascvi_forward.10} parent=1 // pred_check_branch
      %38 = sbr.rel (0) target = $region37
    $region36: #{bascvi_forward.10} parent=1 // pred_region
      _
    $region37: #{bascvi_forward.10} parent=1 // pred_fallthru
      _
    // Predicated region
    $region38: #{bascvi_forward.10} parent=1 // pred_check
      _
    $region39: #{bascvi_forward.10} parent=1 // pred_check_branch
      %40 = sbr.rel (0) target = $region41
    $region40: #{bascvi_forward.10} parent=1 // pred_region
      _
    $region41: #{bascvi_forward.10} parent=1 // pred_fallthru
      _
    // Predicated region
    $region42: #{bascvi_forward.10} parent=1 // pred_check
      _
    $region43: #{bascvi_forward.10} parent=1 // pred_check_branch
      %42 = sbr.rel (0) target = $region45
    $region44: #{bascvi_forward.10} parent=1 // pred_region
      _
    $region45: #{bascvi_forward.10} parent=1 // pred_fallthru
      _
    %v44 = vld [vmem:[%s1] sm:$0xf]
    %v45 = vunpack.c.l.bf16 %v44
    %v46 = vld [vmem:[%s0] sm:$0xff]
    %v47 = vpack.c.bf16 %v46, %v46
    %v48 = vld [vmem:[%s2] sm:$0xf]
    %v49 = vld [vmem:[%s2 + $0x4] sm:$0xf]
    %v50 = vld [vmem:[%s2 + $0x8] sm:$0xf]
    %v51 = vld [vmem:[%s2 + $0xc] sm:$0xf]
    %v52 = vld [vmem:[%s3] sm:$0x1]
    %v54 = vlaneseq
    %v55 = vshrl.u32 %v54, 7
    %v56 = vsub.s32 0, %v55
    %v57 = vrot.slane %v52, %v56
    %v63 = vunpack.c.l.b16 %v48
    %v64 = vunpack.c.l.b16 %v49
    %v65 = vunpack.c.l.b16 %v50
    %v66 = vunpack.c.l.b16 %v51
    %v67 = vpack.c.b16 %v64, %v63
    %v68 = vpack.c.b16 %v66, %v65
    %vm71 = vcmask 261120
    %v73 = vsel %vm71, %v47, 0
    %75 = vmatprep.subr.bf16.mxu0 0
    %76 = vmatpush1.bf16.msra.mxu0 0
    %77 = vmatprep.subr.bf16.mxu0 0
    %78 = vmatpush1.bf16.msra.mxu0 0
    %79 = vmatprep.subr.bf16.mxu0 0
    %80 = vmatpush1.bf16.msra.mxu0 0
    %81 = vmatprep.subr.bf16.mxu0 0
    %82 = vmatpush1.bf16.msra.mxu0 0
    %83 = vmatprep.subr.bf16.mxu0 0
    %84 = vmatpush1.bf16.msra.mxu0 0
    %85 = vmatprep.subr.bf16.mxu0 0
    %86 = vmatpush1.bf16.msra.mxu0 0
    %87 = vmatprep.subr.bf16.mxu0 0
    %88 = vmatpush1.bf16.msra.mxu0 %v68
    %89 = vmatprep.subr.bf16.mxu0 0
    %90 = vmatpush1.bf16.msra.mxu0 %v67
    %91 = vmatprep.subr.bf16.mxu0 0
    %92 = vmatpush2.bf16.msra.mxu0 0
    %93 = vmatprep.subr.bf16.mxu0 0
    %94 = vmatpush2.bf16.msra.mxu0 0
    %95 = vmatprep.subr.bf16.mxu0 0
    %96 = vmatpush2.bf16.msra.mxu0 0
    %97 = vmatprep.subr.bf16.mxu0 0
    %98 = vmatpush2.bf16.msra.mxu0 0
    %99 = vmatprep.subr.bf16.mxu0 0
    %100 = vmatpush2.bf16.msra.mxu0 0
    %101 = vmatprep.subr.bf16.mxu0 0
    %102 = vmatpush2.bf16.msra.mxu0 0
    %103 = vmatprep.subr.bf16.mxu0 0
    %104 = vmatpush2.bf16.msra.mxu0 0
    %105 = vmatprep.subr.bf16.mxu0 0
    %106 = vmatpush2.bf16.msra.mxu0 0
    %107 = vmatprep.mubr.bf16.mxu0 0
    %108 = vmatmul.mubr.bf16.gmra.mxu0 %v73
    %v109 = vpop.f32.mrf.mxu0
    %v110 = vadd.f32 %v57, %v109
    %v111 = vpop.f32.mrf.mxu0
    %v112 = vpop.f32.mrf.mxu0
    %v113 = vpop.f32.mrf.mxu0
    %114 = vdwg.mxu0
    %v115 = vld [vmem:[%s4] sm:$0xff]
    %v116 = vld [vmem:[%s5] sm:$0xff]
    %v117 = vld [vmem:[%s6] sm:$0xff]
    %v118 = vld [vmem:[%s7] sm:$0x1]
    %v119 = vld [vmem:[%s8] sm:$0x1]
    %v120 = vld [vmem:[%s9] sm:$0x1]
    %v121 = vld [vmem:[%s10] sm:$0xf]
    %v122 = vunpack.c.l.bf16 %v121
    %124 = vset.pattern.permute.xlu0 0
    %125 = vperm.xlu0 %124, %v115
    %v126 = vpop.permute.xlu0 %125
    %v128 = vsub.f32 %v45, %v126
    %v129 = vmul.f32 %v128, 1.442695
    %v130 = vpow.pop %v129
    %v131 = vmul.f32 %v116, 1.442695
    %v132 = vpow.pop %v131
    %134 = vset.pattern.permute.xlu0 0
    %135 = vperm.xlu0 %134, %v132
    %v136 = vpop.permute.xlu0 %135
    %v138 = vmul.f32 %v130, %v136
    %v139 = vsub.f32 %v116, %v115
    %141 = vset.pattern.permute.xlu0 0
    %142 = vperm.xlu0 %141, %v139
    %v143 = vpop.permute.xlu0 %142
    %v145 = vadd.f32 %v143, %v45
    %v146 = vsub.f32 0.0, %v110
    %v147 = vmax.f32 %v146, 0.0
    %v148 = vand.u32 2147483647, %v146
    %v149 = vsub.f32 0.0, %v148
    %v150 = vmul.f32 %v149, 1.442695
    %v151 = vpow.pop %v150
    %v152 = vadd.f32 %v151, 1.0
    %v153 = vlog2.pop %v152
    %v154 = vmul.f32 %v153, 0.6931472
    %v155 = vadd.f32 %v147, %v154
    %v157 = vlaneseq
    %v158 = vshrl.u32 %v157, 7
    %v159 = vsub.s32 0, %v158
    %v160 = vrot.slane %v118, %v159
    %v162 = vadd.f32 %v160, %v138
    %v163 = vadd.f32 %v162, 1e-08
    %v164 = vlog2.pop %v163
    %v165 = vmul.f32 %v164, 0.6931472
    %v167 = vlaneseq
    %v168 = vshrl.u32 %v167, 7
    %v169 = vsub.s32 0, %v168
    %v170 = vrot.slane %v119, %v169
    %v172 = vsub.f32 %v170, %v165
    %v173 = vmul.f32 %v160, %v172
    %v174 = vadd.f32 %v146, %v173
    %v175 = vmax.f32 %v174, 0.0
    %v176 = vand.u32 2147483647, %v174
    %v177 = vsub.f32 0.0, %v176
    %v178 = vmul.f32 %v177, 1.442695
    %v179 = vpow.pop %v178
    %v180 = vadd.f32 %v179, 1.0
    %v181 = vlog2.pop %v180
    %v182 = vmul.f32 %v181, 0.6931472
    %v183 = vadd.f32 %v175, %v182
    %v184 = vsub.f32 %v183, %v155
    %v185 = vadd.f32 %v117, %v160
    %v186 = vadd.f32 %v185, 1.0
    %v187 = vmul.f32 %v185, %v186
    %v188 = vadd.f32 %v185, 2.0
    %v189 = vmul.f32 %v187, %v188
    %v190 = vadd.f32 %v185, 3.0
    %v191 = vadd.f32 %v185, 4.0
    %v192 = vmul.f32 %v190, %v191
    %v193 = vadd.f32 %v185, 5.0
    %v194 = vmul.f32 %v192, %v193
    %v195 = vlog2.pop %v189
    %v196 = vmul.f32 %v195, 0.6931472
    %v197 = vlog2.pop %v194
    %v198 = vmul.f32 %v197, 0.6931472
    %v199 = vadd.f32 %v196, %v198
    %v200 = vadd.f32 %v185, 6.0
    %v201 = vrcp.pop %v200
    %v202 = vmul.f32 %v201, %v201
    %v203 = vmul.f32 %v202, 0.0007936508
    %v204 = vsub.f32 0.0027777778, %v203
    %v205 = vmul.f32 %v202, %v204
    %v206 = vsub.f32 0.083333336, %v205
    %v207 = vmul.f32 %v201, %v206
    %v208 = vsub.f32 %v200, 0.5
    %v209 = vlog2.pop %v200
    %v210 = vmul.f32 %v209, 0.6931472
    %v211 = vmul.f32 %v208, %v210
    %v212 = vsub.f32 %v211, %v200
    %v213 = vadd.f32 %v212, 0.9189385
    %v214 = vadd.f32 %v213, %v207
    %v215 = vsub.f32 %v214, %v199
    %v216 = vadd.f32 %v117, 1.0
    %v217 = vadd.f32 %v216, 1.0
    %v218 = vmul.f32 %v216, %v217
    %v219 = vadd.f32 %v216, 2.0
    %v220 = vmul.f32 %v218, %v219
    %v221 = vadd.f32 %v216, 3.0
    %v222 = vadd.f32 %v216, 4.0
    %v223 = vmul.f32 %v221, %v222
    %v224 = vadd.f32 %v216, 5.0
    %v225 = vmul.f32 %v223, %v224
    %v226 = vlog2.pop %v220
    %v227 = vmul.f32 %v226, 0.6931472
    %v228 = vlog2.pop %v225
    %v229 = vmul.f32 %v228, 0.6931472
    %v230 = vadd.f32 %v227, %v229
    %v231 = vadd.f32 %v216, 6.0
    %v232 = vrcp.pop %v231
    %v233 = vmul.f32 %v232, %v232
    %v234 = vmul.f32 %v233, 0.0007936508
    %v235 = vsub.f32 0.0027777778, %v234
    %v236 = vmul.f32 %v233, %v235
    %v237 = vsub.f32 0.083333336, %v236
    %v238 = vmul.f32 %v232, %v237
    %v239 = vsub.f32 %v231, 0.5
    %v240 = vlog2.pop %v231
    %v241 = vmul.f32 %v240, 0.6931472
    %v242 = vmul.f32 %v239, %v241
    %v243 = vsub.f32 %v242, %v231
    %v244 = vadd.f32 %v243, 0.9189385
    %v245 = vadd.f32 %v244, %v238
    %v246 = vsub.f32 %v245, %v230
    %v247 = vsub.f32 %v215, %v246
    %v249 = vlaneseq
    %v250 = vshrl.u32 %v249, 7
    %v251 = vsub.s32 0, %v250
    %v252 = vrot.slane %v120, %v251
    %v254 = vsub.f32 %v247, %v252
    %v255 = vsub.f32 0.0, %v155
    %v256 = vadd.f32 %v255, %v174
    %v257 = vsub.f32 %v145, %v165
    %v258 = vmul.f32 %v117, %v257
    %v259 = vadd.f32 %v256, %v258
    %v260 = vadd.f32 %v259, %v254
    %vm261 = vcmp.lt.f32.partialorder %v117, 1e-08
    %v262 = vsel %vm261, %v184, %v260
    %v263 = vsub.f32 0.0, %v262
    %v264 = vmul.f32 %v263, %v122
    %265 = vadd.xlane.f32.xlu0 %v264
    %v266 = vpop.xlane.xlu0 %265
    %v267 = vpack.c.bf16 %v130, %v130
    %268 = vst [vmem:[#allocation2] sm:$0xf] %v267
    %v269 = vpack.c.bf16 %v138, %v138
    %270 = vst [vmem:[%s12] sm:$0xf] %v269
    %v271 = vpack.c.bf16 %v110, %v110
    %272 = vst [vmem:[%s13] sm:$0xf] %v271
    %p273 = scmp.eq.s32.totalorder 0, 0
    // Predicated region
    $region46: #{bascvi_forward.10} parent=1 // pred_check
      %p274 = pneg %p273
    $region47: #{bascvi_forward.10} parent=1 // pred_check_branch
      %276 = sbr.rel (%p274) target = $region49
    $region48: #{bascvi_forward.10} parent=1 // pred_region
      %vm277 = vcmask 7168
      %278 = vst.msk [vmem:[%s14] sm:$0xff] %vm277, 0.0
    $region49: #{bascvi_forward.10} parent=1 // pred_fallthru
      _
    %v279 = vld [vmem:[%s14] sm:$0xff]
    %v280 = vadd.f32 %v279, %v266
    %vm281 = vcmask 7168
    %282 = vst.msk [vmem:[%s14] sm:$0xff] %vm281, %v280
    // Predicated region
    $region50: #{bascvi_forward.10} parent=1 // pred_check
      _
    $region51: #{bascvi_forward.10} parent=1 // pred_check_branch
      %284 = sbr.rel (0) target = $region53
    $region52: #{bascvi_forward.10} parent=1 // pred_region
      %s286 = ssub.s32 64, 64
      %287 = vsyncadd [#allocation3], %s286
      %s289 = sshll.u32 [#allocation2], 4
      %s290 = int_to_ptr.vmem [resolvable:$true] %s289
      %292 = dma.vmem_to_hbm [thread:$0]  %s290, 64, %s11, [#allocation3]
    $region53: #{bascvi_forward.10} parent=1 // pred_fallthru
      _
    // Predicated region
    $region54: #{bascvi_forward.10} parent=1 // pred_check
      _
    $region55: #{bascvi_forward.10} parent=1 // pred_check_branch
      %294 = sbr.rel (0) target = $region57
    $region56: #{bascvi_forward.10} parent=1 // pred_region
      _
    $region57: #{bascvi_forward.10} parent=1 // pred_fallthru
      _
    // Predicated region
    $region58: #{bascvi_forward.10} parent=1 // pred_check
      _
    $region59: #{bascvi_forward.10} parent=1 // pred_check_branch
      %296 = sbr.rel (0) target = $region61
    $region60: #{bascvi_forward.10} parent=1 // pred_region
      _
    $region61: #{bascvi_forward.10} parent=1 // pred_fallthru
      _
    // Predicated region
    $region62: #{bascvi_forward.10} parent=1 // pred_check
      _
    $region63: #{bascvi_forward.10} parent=1 // pred_check_branch
      %298 = sbr.rel (0) target = $region65
    $region64: #{bascvi_forward.10} parent=1 // pred_region
      _
    $region65: #{bascvi_forward.10} parent=1 // pred_fallthru
      _
    // Predicated region
    $region66: #{bascvi_forward.10} parent=1 // pred_check
      _
    $region67: #{bascvi_forward.10} parent=1 // pred_check_branch
      %300 = sbr.rel (0) target = $region69
    $region68: #{bascvi_forward.10} parent=1 // pred_region
      %301 = dma.done [#allocation3], 64
    $region69: #{bascvi_forward.10} parent=1 // pred_fallthru
      _
    // Predicated region
    $region70: #{bascvi_forward.10} parent=1 // pred_check
      _
    $region71: #{bascvi_forward.10} parent=1 // pred_check_branch
      %303 = sbr.rel (0) target = $region73
    $region72: #{bascvi_forward.10} parent=1 // pred_region
      _
    $region73: #{bascvi_forward.10} parent=1 // pred_fallthru
      _
    // Predicated region
    $region74: #{bascvi_forward.10} parent=1 // pred_check
      _
    $region75: #{bascvi_forward.10} parent=1 // pred_check_branch
      %305 = sbr.rel (0) target = $region77
    $region76: #{bascvi_forward.10} parent=1 // pred_region
      _
    $region77: #{bascvi_forward.10} parent=1 // pred_fallthru
      _
    // Predicated region
    $region78: #{bascvi_forward.10} parent=1 // pred_check
      _
    $region79: #{bascvi_forward.10} parent=1 // pred_check_branch
      %307 = sbr.rel (0) target = $region81
    $region80: #{bascvi_forward.10} parent=1 // pred_region
      _
    $region81: #{bascvi_forward.10} parent=1 // pred_fallthru
      _
    %308 = vsyncpa [#allocation3], 1

</llo_original>
